<compile_context>
chip_gen: v7x
topology: tpu7x:2x2x1
jax: 0.10.0
libtpu: 0.0.40
codegen_flags: <defaults>
</compile_context>

<pallas_src>
import functools

import jax
import jax.numpy as jnp
from jax.experimental import pallas as pl
from jax.experimental.pallas import tpu as pltpu

BN_EPS = 1e-5  # PyTorch BatchNorm1d default eps


# --------------------------------------------------------------------------- #
# Fused kernel: whole network forward for one batch element.
# --------------------------------------------------------------------------- #
def _fused_pointnet_kernel(*refs, n_mlp1, n_mlp2, out_size, use_fc):
    # refs = (x,
    #         [w1_i, shift1_i] * n_mlp1,
    #         w2_0_pre, w2_0_pool, shift2_0,
    #         [w2_j, shift2_j] * (n_mlp2 - 1),
    #         [fc_w, fc_b]  (if use_fc),
    #         o_ref)
    it = iter(refs)
    x_ref = next(it)
    h = x_ref[0]                                          # (Cin, N) f32

    # ---- mlp1: relu(W' @ h + shift), BN scale already folded into W' -------
    second = None
    for i in range(n_mlp1):
        w = next(it)[...]                                 # (Cout, Cin)
        s = next(it)[...]                                 # (Cout, 1)
        h = jnp.maximum(
            jnp.dot(w, h, preferred_element_type=jnp.float32) + s, 0.0)
        if i == 1:
            second = h                                    # (C2, N), stays on-chip

    # ---- global max pool (AdaptiveMaxPool1d(1)) ------------------------------
    pooled = jnp.max(h, axis=-1, keepdims=True)           # (C_last, 1)

    # ---- AdaptiveMaxPool1d(out_size) on second-layer activations -------------
    c2, n = second.shape
    if n % out_size == 0:
        k = n // out_size
        pre = jnp.max(second.reshape(c2, out_size, k), axis=-1)   # (C2, S)
    else:
        # PyTorch window boundaries: [floor(j*N/S), ceil((j+1)*N/S))
        pos = jax.lax.broadcasted_iota(jnp.int32, (1, n), 1)
        cols = []
        for j in range(out_size):
            a = (j * n) // out_size
            b = ((j + 1) * n + out_size - 1) // out_size
            m = (pos >= a) & (pos < b)
            cols.append(jnp.max(jnp.where(m, second, -jnp.inf),
                                axis=-1, keepdims=True))
        pre = jnp.concatenate(cols, axis=-1)

    # ---- first mlp2 layer with the channel-concat folded into the weights ----
    w_pre = next(it)[...]                                 # (Cout, C2)
    w_pool = next(it)[...]                                # (Cout, C_last)
    s0 = next(it)[...]                                    # (Cout, 1)
    # Pooled contribution is (Cout, 1): fold it into the shift BEFORE the
    # lane-broadcast so only one broadcasted add hits the (Cout, S) tile.
    shift0 = jnp.dot(w_pool, pooled, preferred_element_type=jnp.float32) + s0
    g = jnp.maximum(
        jnp.dot(w_pre, pre, preferred_element_type=jnp.float32) + shift0, 0.0)

    # ---- remaining mlp2 layers ------------------------------------------------
    for _ in range(1, n_mlp2):
        w = next(it)[...]
        s = next(it)[...]
        g = jnp.maximum(
            jnp.dot(w, g, preferred_element_type=jnp.float32) + s, 0.0)

    # ---- final fc (Conv1d k=1 with bias, no BN/ReLU) --------------------------
    if use_fc:
        fc_w = next(it)[...]
        fc_b = next(it)[...]
        g = jnp.dot(fc_w, g, preferred_element_type=jnp.float32) + fc_b

    o_ref = next(it)
    o_ref[0] = g.astype(o_ref.dtype)


# --------------------------------------------------------------------------- #
# Wrapper: one pallas_call for the whole network, grid over batch.
# --------------------------------------------------------------------------- #
def feature_pointnet_forward(x, params, output_size):
    B, cin, n = x.shape
    mlp1 = params["mlp1"]
    mlp2 = params["mlp2"]
    c_second = mlp1[1][0].shape[0]     # channels of 2nd mlp1 layer (pre-pool feat)

    inputs = [x]
    in_specs = [pl.BlockSpec((1, cin, n), lambda b: (b, 0, 0))]

    def add_const(a):
        zeros = (0,) * a.ndim
        inputs.append(a)
        # Constant index_map: block index never changes -> Pallas skips re-DMA
        # between consecutive grid steps, weights stay resident in VMEM.
        in_specs.append(pl.BlockSpec(a.shape, lambda b, z=zeros: z))

    for (w, s) in mlp1:
        add_const(w)
        add_const(s)

    # Split the first mlp2 weight along Cin: [pre-pooled cols | pooled cols].
    w0, s0 = mlp2[0]
    add_const(w0[:, :c_second])
    add_const(w0[:, c_second:])
    add_const(s0)
    for (w, s) in mlp2[1:]:
        add_const(w)
        add_const(s)

    use_fc = output_size > 0
    if use_fc:
        add_const(params["fc_w"])
        add_const(params["fc_b"])
        c_out = params["fc_w"].shape[0]
    else:
        c_out = mlp2[-1][0].shape[0]

    kernel = functools.partial(
        _fused_pointnet_kernel,
        n_mlp1=len(mlp1), n_mlp2=len(mlp2),
        out_size=output_size, use_fc=use_fc)

    return pl.pallas_call(
        kernel,
        out_shape=jax.ShapeDtypeStruct((B, c_out, output_size), x.dtype),
        grid=(B,),
        in_specs=in_specs,
        out_specs=pl.BlockSpec((1, c_out, output_size), lambda b: (b, 0, 0)),
        compiler_params=pltpu.CompilerParams(
            dimension_semantics=("parallel",)),
    )(*inputs)


# --------------------------------------------------------------------------- #
# Parameters (deterministic, synthetic) with BN folded into (W', shift)
# --------------------------------------------------------------------------- #
def make_layer_params(key, cin, cout):
    kw, kb, kg, kbt, km, kv = jax.random.split(key, 6)
    w = jax.random.normal(kw, (cout, cin), jnp.float32) / jnp.sqrt(float(cin))
    bias = 0.05 * jax.random.normal(kb, (cout,), jnp.float32)
    gamma = 1.0 + 0.1 * jax.random.normal(kg, (cout,), jnp.float32)
    beta = 0.05 * jax.random.normal(kbt, (cout,), jnp.float32)
    mean = 0.1 * jax.random.normal(km, (cout,), jnp.float32)
    var = 1.0 + 0.1 * jnp.abs(jax.random.normal(kv, (cout,), jnp.float32))
    # BatchNorm1d (eval): y = gamma*(Wx + bias - mean)/sqrt(var+eps) + beta
    s = gamma / jnp.sqrt(var + BN_EPS)
    w_folded = w * s[:, None]                         # exact row-wise fold
    shift = ((bias - mean) * s + beta).reshape(cout, 1)
    return w_folded, shift


def make_params(key, input_channel, mlp1, mlp2, output_size):
    params = {"mlp1": [], "mlp2": []}
    cin = input_channel
    for cout in mlp1:
        key, sub = jax.random.split(key)
        params["mlp1"].append(make_layer_params(sub, cin, cout))
        cin = cout
    cin = cin + mlp1[1]
    for cout in mlp2:
        key, sub = jax.random.split(key)
        params["mlp2"].append(make_layer_params(sub, cin, cout))
        cin = cout
    key, kw, kb = jax.random.split(key, 3)
    params["fc_w"] = jax.random.normal(kw, (output_size, cin), jnp.float32) / jnp.sqrt(float(cin))
    params["fc_b"] = (0.05 * jax.random.normal(kb, (output_size,), jnp.float32)).reshape(output_size, 1)
    return params


# --------------------------------------------------------------------------- #
# Pure-JAX reference (same folded parameterization; math identical to PyTorch)
# --------------------------------------------------------------------------- #
def _ref_adaptive_maxpool(x, s):
    n = x.shape[-1]
    cols = []
    for j in range(s):
        a = (j * n) // s
        b = ((j + 1) * n + s - 1) // s
        cols.append(jnp.max(x[:, :, a:b], axis=-1, keepdims=True))
    return jnp.concatenate(cols, axis=-1)


def ref_forward(x, params, output_size):
    def cbr(x, w, sh):
        y = jnp.einsum("oc,bcn->bon", w, x)
        return jnp.maximum(y + sh[None], 0.0)

    second = None
    for i, (w, sh) in enumerate(params["mlp1"]):
        x = cbr(x, w, sh)
        if i == 1:
            second = x
    pooled = jnp.max(x, axis=-1, keepdims=True)
    pre = _ref_adaptive_maxpool(second, output_size)
    pooled_e = jnp.broadcast_to(pooled, (pooled.shape[0], pooled.shape[1], pre.shape[2]))
    x = jnp.concatenate([pre, pooled_e], axis=1)
    for (w, sh) in params["mlp2"]:
        x = cbr(x, w, sh)
    if output_size > 0:
        x = jnp.einsum("oc,bcn->bon", params["fc_w"], x) + params["fc_b"][None]
    return x


# --------------------------------------------------------------------------- #
if __name__ == "__main__":
    B, C_IN, N = 2, 4, 128
    MLP1 = [16, 32, 64]
    MLP2 = [64, 32]
    OUTPUT_SIZE = 16        # return_intermediate=False path only

    key = jax.random.PRNGKey(0)
    kx, kp = jax.random.split(key)
    x = jax.random.normal(kx, (B, C_IN, N), jnp.float32)
    params = make_params(kp, C_IN, MLP1, MLP2, OUTPUT_SIZE)

    out = feature_pointnet_forward(x, params, OUTPUT_SIZE)
    out = jax.block_until_ready(out)

    ref = jax.block_until_ready(ref_forward(x, params, OUTPUT_SIZE))
    assert out.shape == (B, OUTPUT_SIZE, OUTPUT_SIZE), out.shape
    assert jnp.allclose(out, ref, atol=1e-3, rtol=1e-3), float(jnp.max(jnp.abs(out - ref)))

    print("KERNEL_OK")
</pallas_src>

<mosaic_0001>
module attributes {stable_mosaic.version = 11 : i64} {
  func.func @_fused_pointnet_kernel(%arg0: i32, %arg1: memref<1x4x128xf32, #tpu.memory_space<vmem>>, %arg2: memref<16x4xf32, #tpu.memory_space<vmem>>, %arg3: memref<16x1xf32, #tpu.memory_space<vmem>>, %arg4: memref<32x16xf32, #tpu.memory_space<vmem>>, %arg5: memref<32x1xf32, #tpu.memory_space<vmem>>, %arg6: memref<64x32xf32, #tpu.memory_space<vmem>>, %arg7: memref<64x1xf32, #tpu.memory_space<vmem>>, %arg8: memref<64x32xf32, #tpu.memory_space<vmem>>, %arg9: memref<64x64xf32, #tpu.memory_space<vmem>>, %arg10: memref<64x1xf32, #tpu.memory_space<vmem>>, %arg11: memref<32x64xf32, #tpu.memory_space<vmem>>, %arg12: memref<32x1xf32, #tpu.memory_space<vmem>>, %arg13: memref<16x32xf32, #tpu.memory_space<vmem>>, %arg14: memref<16x1xf32, #tpu.memory_space<vmem>>, %arg15: memref<1x16x16xf32, #tpu.memory_space<vmem>>) attributes {dimension_semantics = [#tpu.dimension_semantics<parallel>], iteration_bounds = array<i64: 2>, scalar_prefetch = 0 : i64, scratch_operands = 0 : i64, tpu.core_type = #tpu.core_type<tc>, window_params = [{transform_indices = @transform_0, window_bounds = array<i64: 1, 4, 128>}, {pipeline_mode = #tpu.pipeline_mode<synchronous>, transform_indices = @transform_1, window_bounds = array<i64: 16, 4>}, {pipeline_mode = #tpu.pipeline_mode<synchronous>, transform_indices = @transform_2, window_bounds = array<i64: 16, 1>}, {pipeline_mode = #tpu.pipeline_mode<synchronous>, transform_indices = @transform_3, window_bounds = array<i64: 32, 16>}, {pipeline_mode = #tpu.pipeline_mode<synchronous>, transform_indices = @transform_4, window_bounds = array<i64: 32, 1>}, {pipeline_mode = #tpu.pipeline_mode<synchronous>, transform_indices = @transform_5, window_bounds = array<i64: 64, 32>}, {pipeline_mode = #tpu.pipeline_mode<synchronous>, transform_indices = @transform_6, window_bounds = array<i64: 64, 1>}, {pipeline_mode = #tpu.pipeline_mode<synchronous>, transform_indices = @transform_7, window_bounds = array<i64: 64, 32>}, {pipeline_mode = #tpu.pipeline_mode<synchronous>, transform_indices = @transform_8, window_bounds = array<i64: 64, 64>}, {pipeline_mode = #tpu.pipeline_mode<synchronous>, transform_indices = @transform_9, window_bounds = array<i64: 64, 1>}, {pipeline_mode = #tpu.pipeline_mode<synchronous>, transform_indices = @transform_10, window_bounds = array<i64: 32, 64>}, {pipeline_mode = #tpu.pipeline_mode<synchronous>, transform_indices = @transform_11, window_bounds = array<i64: 32, 1>}, {pipeline_mode = #tpu.pipeline_mode<synchronous>, transform_indices = @transform_12, window_bounds = array<i64: 16, 32>}, {pipeline_mode = #tpu.pipeline_mode<synchronous>, transform_indices = @transform_13, window_bounds = array<i64: 16, 1>}, {transform_indices = @transform_14, window_bounds = array<i64: 1, 16, 16>}]} {
    %c0 = arith.constant 0 : index
    %c0_0 = arith.constant 0 : index
    %c0_1 = arith.constant 0 : index
    %0 = vector.load %arg1[%c0, %c0_0, %c0_1] : memref<1x4x128xf32, #tpu.memory_space<vmem>>, vector<1x4x128xf32>
    %1 = vector.shape_cast %0 : vector<1x4x128xf32> to vector<4x128xf32>
    %c0_2 = arith.constant 0 : index
    %c0_3 = arith.constant 0 : index
    %2 = vector.load %arg2[%c0_2, %c0_3] : memref<16x4xf32, #tpu.memory_space<vmem>>, vector<16x4xf32>
    %c0_4 = arith.constant 0 : index
    %c0_5 = arith.constant 0 : index
    %3 = vector.load %arg3[%c0_4, %c0_5] : memref<16x1xf32, #tpu.memory_space<vmem>>, vector<16x1xf32>
    %cst = arith.constant dense<0.000000e+00> : vector<16x128xf32>
    %4 = tpu.matmul %2, %1, %cst {dimension_numbers = #tpu.dot_dimension_numbers<[1], [0], [0], [1], [0, 0, 1, 1], [], []>} : vector<16x4xf32>, vector<4x128xf32>, vector<16x128xf32> -> vector<16x128xf32>
    %5 = vector.broadcast %3 : vector<16x1xf32> to vector<16x128xf32>
    %6 = arith.addf %4, %5 : vector<16x128xf32>
    %cst_6 = arith.constant 0.000000e+00 : f32
    %7 = vector.broadcast %cst_6 : f32 to vector<16x128xf32>
    %8 = arith.maximumf %6, %7 : vector<16x128xf32>
    %c0_7 = arith.constant 0 : index
    %c0_8 = arith.constant 0 : index
    %9 = vector.load %arg4[%c0_7, %c0_8] : memref<32x16xf32, #tpu.memory_space<vmem>>, vector<32x16xf32>
    %c0_9 = arith.constant 0 : index
    %c0_10 = arith.constant 0 : index
    %10 = vector.load %arg5[%c0_9, %c0_10] : memref<32x1xf32, #tpu.memory_space<vmem>>, vector<32x1xf32>
    %cst_11 = arith.constant dense<0.000000e+00> : vector<32x128xf32>
    %11 = tpu.matmul %9, %8, %cst_11 {dimension_numbers = #tpu.dot_dimension_numbers<[1], [0], [0], [1], [0, 0, 1, 1], [], []>} : vector<32x16xf32>, vector<16x128xf32>, vector<32x128xf32> -> vector<32x128xf32>
    %12 = vector.broadcast %10 : vector<32x1xf32> to vector<32x128xf32>
    %13 = arith.addf %11, %12 : vector<32x128xf32>
    %cst_12 = arith.constant 0.000000e+00 : f32
    %14 = vector.broadcast %cst_12 : f32 to vector<32x128xf32>
    %15 = arith.maximumf %13, %14 : vector<32x128xf32>
    %c0_13 = arith.constant 0 : index
    %c0_14 = arith.constant 0 : index
    %16 = vector.load %arg6[%c0_13, %c0_14] : memref<64x32xf32, #tpu.memory_space<vmem>>, vector<64x32xf32>
    %c0_15 = arith.constant 0 : index
    %c0_16 = arith.constant 0 : index
    %17 = vector.load %arg7[%c0_15, %c0_16] : memref<64x1xf32, #tpu.memory_space<vmem>>, vector<64x1xf32>
    %cst_17 = arith.constant dense<0.000000e+00> : vector<64x128xf32>
    %18 = tpu.matmul %16, %15, %cst_17 {dimension_numbers = #tpu.dot_dimension_numbers<[1], [0], [0], [1], [0, 0, 1, 1], [], []>} : vector<64x32xf32>, vector<32x128xf32>, vector<64x128xf32> -> vector<64x128xf32>
    %19 = vector.broadcast %17 : vector<64x1xf32> to vector<64x128xf32>
    %20 = arith.addf %18, %19 : vector<64x128xf32>
    %cst_18 = arith.constant 0.000000e+00 : f32
    %21 = vector.broadcast %cst_18 : f32 to vector<64x128xf32>
    %22 = arith.maximumf %20, %21 : vector<64x128xf32>
    %cst_19 = arith.constant dense<0xFF800000> : vector<64xf32>
    %23 = vector.multi_reduction <maximumf>, %22, %cst_19 [1] : vector<64x128xf32> to vector<64xf32>
    %24 = vector.shape_cast %23 : vector<64xf32> to vector<64x1xf32>
    %25 = vector.shape_cast %15 : vector<32x128xf32> to vector<32x16x8xf32>
    %cst_20 = arith.constant dense<0xFF800000> : vector<32x16xf32>
    %26 = vector.multi_reduction <maximumf>, %25, %cst_20 [2] : vector<32x16x8xf32> to vector<32x16xf32>
    %c0_21 = arith.constant 0 : index
    %c0_22 = arith.constant 0 : index
    %27 = vector.load %arg8[%c0_21, %c0_22] : memref<64x32xf32, #tpu.memory_space<vmem>>, vector<64x32xf32>
    %c0_23 = arith.constant 0 : index
    %c0_24 = arith.constant 0 : index
    %28 = vector.load %arg9[%c0_23, %c0_24] : memref<64x64xf32, #tpu.memory_space<vmem>>, vector<64x64xf32>
    %c0_25 = arith.constant 0 : index
    %c0_26 = arith.constant 0 : index
    %29 = vector.load %arg10[%c0_25, %c0_26] : memref<64x1xf32, #tpu.memory_space<vmem>>, vector<64x1xf32>
    %cst_27 = arith.constant dense<0.000000e+00> : vector<64x1xf32>
    %30 = tpu.matmul %28, %24, %cst_27 {dimension_numbers = #tpu.dot_dimension_numbers<[1], [0], [0], [1], [0, 0, 1, 1], [], []>} : vector<64x64xf32>, vector<64x1xf32>, vector<64x1xf32> -> vector<64x1xf32>
    %31 = arith.addf %30, %29 : vector<64x1xf32>
    %cst_28 = arith.constant dense<0.000000e+00> : vector<64x16xf32>
    %32 = tpu.matmul %27, %26, %cst_28 {dimension_numbers = #tpu.dot_dimension_numbers<[1], [0], [0], [1], [0, 0, 1, 1], [], []>} : vector<64x32xf32>, vector<32x16xf32>, vector<64x16xf32> -> vector<64x16xf32>
    %33 = vector.broadcast %31 : vector<64x1xf32> to vector<64x16xf32>
    %34 = arith.addf %32, %33 : vector<64x16xf32>
    %cst_29 = arith.constant 0.000000e+00 : f32
    %35 = vector.broadcast %cst_29 : f32 to vector<64x16xf32>
    %36 = arith.maximumf %34, %35 : vector<64x16xf32>
    %c0_30 = arith.constant 0 : index
    %c0_31 = arith.constant 0 : index
    %37 = vector.load %arg11[%c0_30, %c0_31] : memref<32x64xf32, #tpu.memory_space<vmem>>, vector<32x64xf32>
    %c0_32 = arith.constant 0 : index
    %c0_33 = arith.constant 0 : index
    %38 = vector.load %arg12[%c0_32, %c0_33] : memref<32x1xf32, #tpu.memory_space<vmem>>, vector<32x1xf32>
    %cst_34 = arith.constant dense<0.000000e+00> : vector<32x16xf32>
    %39 = tpu.matmul %37, %36, %cst_34 {dimension_numbers = #tpu.dot_dimension_numbers<[1], [0], [0], [1], [0, 0, 1, 1], [], []>} : vector<32x64xf32>, vector<64x16xf32>, vector<32x16xf32> -> vector<32x16xf32>
    %40 = vector.broadcast %38 : vector<32x1xf32> to vector<32x16xf32>
    %41 = arith.addf %39, %40 : vector<32x16xf32>
    %cst_35 = arith.constant 0.000000e+00 : f32
    %42 = vector.broadcast %cst_35 : f32 to vector<32x16xf32>
    %43 = arith.maximumf %41, %42 : vector<32x16xf32>
    %c0_36 = arith.constant 0 : index
    %c0_37 = arith.constant 0 : index
    %44 = vector.load %arg13[%c0_36, %c0_37] : memref<16x32xf32, #tpu.memory_space<vmem>>, vector<16x32xf32>
    %c0_38 = arith.constant 0 : index
    %c0_39 = arith.constant 0 : index
    %45 = vector.load %arg14[%c0_38, %c0_39] : memref<16x1xf32, #tpu.memory_space<vmem>>, vector<16x1xf32>
    %cst_40 = arith.constant dense<0.000000e+00> : vector<16x16xf32>
    %46 = tpu.matmul %44, %43, %cst_40 {dimension_numbers = #tpu.dot_dimension_numbers<[1], [0], [0], [1], [0, 0, 1, 1], [], []>} : vector<16x32xf32>, vector<32x16xf32>, vector<16x16xf32> -> vector<16x16xf32>
    %47 = vector.broadcast %45 : vector<16x1xf32> to vector<16x16xf32>
    %48 = arith.addf %46, %47 : vector<16x16xf32>
    %c0_41 = arith.constant 0 : index
    %c0_42 = arith.constant 0 : index
    %c0_43 = arith.constant 0 : index
    %49 = vector.load %arg15[%c0_41, %c0_42, %c0_43] : memref<1x16x16xf32, #tpu.memory_space<vmem>>, vector<1x16x16xf32>
    %50 = vector.shape_cast %49 : vector<1x16x16xf32> to vector<16x16xf32>
    %51 = vector.shape_cast %48 : vector<16x16xf32> to vector<1x16x16xf32>
    tpu.vector_store %arg15[%c0_41, %c0_42, %c0_43], %51 {strides = array<i32>} : memref<1x16x16xf32, #tpu.memory_space<vmem>>, vector<1x16x16xf32>,
    return
  }
  func.func @transform_0(%arg0: i32) -> (i32, i32, i32) {
    %c0_i32 = arith.constant 0 : i32
    %c0_i32_0 = arith.constant 0 : i32
    %c0_i32_1 = arith.constant 0 : i32
    return %arg0, %c0_i32, %c0_i32_0 : i32, i32, i32
  }
  func.func @transform_1(%arg0: i32) -> (i32, i32) {
    %c0_i32 = arith.constant 0 : i32
    %c0_i32_0 = arith.constant 0 : i32
    %c0_i32_1 = arith.constant 0 : i32
    return %c0_i32, %c0_i32_0 : i32, i32
  }
  func.func @transform_2(%arg0: i32) -> (i32, i32) {
    %c0_i32 = arith.constant 0 : i32
    %c0_i32_0 = arith.constant 0 : i32
    %c0_i32_1 = arith.constant 0 : i32
    return %c0_i32, %c0_i32_0 : i32, i32
  }
  func.func @transform_3(%arg0: i32) -> (i32, i32) {
    %c0_i32 = arith.constant 0 : i32
    %c0_i32_0 = arith.constant 0 : i32
    %c0_i32_1 = arith.constant 0 : i32
    return %c0_i32, %c0_i32_0 : i32, i32
  }
  func.func @transform_4(%arg0: i32) -> (i32, i32) {
    %c0_i32 = arith.constant 0 : i32
    %c0_i32_0 = arith.constant 0 : i32
    %c0_i32_1 = arith.constant 0 : i32
    return %c0_i32, %c0_i32_0 : i32, i32
  }
  func.func @transform_5(%arg0: i32) -> (i32, i32) {
    %c0_i32 = arith.constant 0 : i32
    %c0_i32_0 = arith.constant 0 : i32
    %c0_i32_1 = arith.constant 0 : i32
    return %c0_i32, %c0_i32_0 : i32, i32
  }
  func.func @transform_6(%arg0: i32) -> (i32, i32) {
    %c0_i32 = arith.constant 0 : i32
    %c0_i32_0 = arith.constant 0 : i32
    %c0_i32_1 = arith.constant 0 : i32
    return %c0_i32, %c0_i32_0 : i32, i32
  }
  func.func @transform_7(%arg0: i32) -> (i32, i32) {
    %c0_i32 = arith.constant 0 : i32
    %c0_i32_0 = arith.constant 0 : i32
    %c0_i32_1 = arith.constant 0 : i32
    return %c0_i32, %c0_i32_0 : i32, i32
  }
  func.func @transform_8(%arg0: i32) -> (i32, i32) {
    %c0_i32 = arith.constant 0 : i32
    %c0_i32_0 = arith.constant 0 : i32
    %c0_i32_1 = arith.constant 0 : i32
    return %c0_i32, %c0_i32_0 : i32, i32
  }
  func.func @transform_9(%arg0: i32) -> (i32, i32) {
    %c0_i32 = arith.constant 0 : i32
    %c0_i32_0 = arith.constant 0 : i32
    %c0_i32_1 = arith.constant 0 : i32
    return %c0_i32, %c0_i32_0 : i32, i32
  }
  func.func @transform_10(%arg0: i32) -> (i32, i32) {
    %c0_i32 = arith.constant 0 : i32
    %c0_i32_0 = arith.constant 0 : i32
    %c0_i32_1 = arith.constant 0 : i32
    return %c0_i32, %c0_i32_0 : i32, i32
  }
  func.func @transform_11(%arg0: i32) -> (i32, i32) {
    %c0_i32 = arith.constant 0 : i32
    %c0_i32_0 = arith.constant 0 : i32
    %c0_i32_1 = arith.constant 0 : i32
    return %c0_i32, %c0_i32_0 : i32, i32
  }
  func.func @transform_12(%arg0: i32) -> (i32, i32) {
    %c0_i32 = arith.constant 0 : i32
    %c0_i32_0 = arith.constant 0 : i32
    %c0_i32_1 = arith.constant 0 : i32
    return %c0_i32, %c0_i32_0 : i32, i32
  }
  func.func @transform_13(%arg0: i32) -> (i32, i32) {
    %c0_i32 = arith.constant 0 : i32
    %c0_i32_0 = arith.constant 0 : i32
    %c0_i32_1 = arith.constant 0 : i32
    return %c0_i32, %c0_i32_0 : i32, i32
  }
  func.func @transform_14(%arg0: i32) -> (i32, i32, i32) {
    %c0_i32 = arith.constant 0 : i32
    %c0_i32_0 = arith.constant 0 : i32
    %c0_i32_1 = arith.constant 0 : i32
    return %arg0, %c0_i32, %c0_i32_0 : i32, i32, i32
  }
}

</mosaic_0001>

<llo_original>
// kernel: tpu_custom_call.1
$region0: #{tpu_custom_call.1}
  #allocation0 [shape = 'u32[]', space=smem, size = 0x4, offset = 0x4, fixed_abs, tag = 'smem constant byte address 0x4 - core index']
  #allocation1 [shape = 'u32[144,128]{1,0:T(1,128)}', space=vmem, size = 0x12000, scoped, tag = 'internal scratch']
  %s0 = inlined_call_operand.vmem [shape: f32[2,4,128], index: 0, kind: input, shape index: {}]
  %s1 = inlined_call_operand.vmem [shape: f32[16,4], index: 1, kind: input, shape index: {}]
  %s2 = inlined_call_operand.vmem [shape: f32[16,1], index: 2, kind: input, shape index: {}]
  %s3 = inlined_call_operand.vmem [shape: f32[32,16], index: 3, kind: input, shape index: {}]
  %s4 = inlined_call_operand.vmem [shape: f32[32,1], index: 4, kind: input, shape index: {}]
  %s5 = inlined_call_operand.vmem [shape: f32[64,32], index: 5, kind: input, shape index: {}]
  %s6 = inlined_call_operand.vmem [shape: f32[64,1], index: 6, kind: input, shape index: {}]
  %s7 = inlined_call_operand.vmem [shape: f32[64,32], index: 7, kind: input, shape index: {}]
  %s8 = inlined_call_operand.vmem [shape: f32[64,64], index: 8, kind: input, shape index: {}]
  %s9 = inlined_call_operand.vmem [shape: f32[64,1], index: 9, kind: input, shape index: {}]
  %s10 = inlined_call_operand.vmem [shape: f32[32,64], index: 10, kind: input, shape index: {}]
  %s11 = inlined_call_operand.vmem [shape: f32[32,1], index: 11, kind: input, shape index: {}]
  %s12 = inlined_call_operand.vmem [shape: f32[16,32], index: 12, kind: input, shape index: {}]
  %s13 = inlined_call_operand.vmem [shape: f32[16,1], index: 13, kind: input, shape index: {}]
  %s14 = inlined_call_operand.hbm [shape: f32[2,16,16], index: 14, kind: output, shape index: {}]
  %s15 = sld [smem:[#allocation0]]
  $region89: #{tpu_custom_call.1} parent=0
    _
  %s17 = ssub.s32 1, %s15
  %s18 = scalar_select 0, %s17, %s15
  $region1: #{tpu_custom_call.1} parent=0
    #allocation2 [shape = 'u8[16384]{0}', space=vmem, size = 0x4000, scoped, tag = 'output window, operand 0']
    #allocation3 [shape = 's32[2]{0}', space=sflag, size = 0x8, scoped, tag = 'scoped memory for tpu_custom_call.1']
    %19 = vsyncpa [#allocation3], 0
    %s20 = scalar_lea.sflag [#allocation3], 1
    %21 = vsyncpa %s20, 0
    loop: start=0, step=1, limit=4
    $region2: #{tpu_custom_call.1} parent=1 // loop_pre_header
      _
    $region3: #{tpu_custom_call.1} parent=1 // loop_header
      %s23 = sphi 0, %s27
      %p24 = scmp.ge.s32.totalorder %s23, 4
      %s33 = sphi 0, %s35
      %s36 = sphi 0, %s33
      %s37 = sphi 0, %s36
      %s53 = sphi 0, %s37
      %s57 = sphi 0, %s57
      %s59 = sphi 0, %s57
      %s60 = sphi 0, %s59
      %s74 = sphi 0, %s60
      %s78 = sphi 0, %s78
      %s80 = sphi 0, %s78
      %s81 = sphi 0, %s80
      %s95 = sphi 0, %s81
      %s99 = sphi 0, %s99
      %s101 = sphi 0, %s99
      %s102 = sphi 0, %s101
      %s116 = sphi 0, %s102
      %s120 = sphi 0, %s120
      %s122 = sphi 0, %s120
      %s123 = sphi 0, %s122
      %s137 = sphi 0, %s123
      %s141 = sphi 0, %s141
      %s143 = sphi 0, %s141
      %s144 = sphi 0, %s143
      %s158 = sphi 0, %s144
      %s162 = sphi 0, %s162
      %s164 = sphi 0, %s162
      %s165 = sphi 0, %s164
      %s179 = sphi 0, %s165
      %s183 = sphi 0, %s183
      %s185 = sphi 0, %s183
      %s186 = sphi 0, %s185
      %s200 = sphi 0, %s186
      %s204 = sphi 0, %s204
      %s206 = sphi 0, %s204
      %s207 = sphi 0, %s206
      %s221 = sphi 0, %s207
      %s225 = sphi 0, %s225
      %s227 = sphi 0, %s225
      %s228 = sphi 0, %s227
      %s242 = sphi 0, %s228
      %s246 = sphi 0, %s246
      %s248 = sphi 0, %s246
      %s249 = sphi 0, %s248
      %s263 = sphi 0, %s249
      %s267 = sphi 0, %s267
      %s269 = sphi 0, %s267
      %s270 = sphi 0, %s269
      %s284 = sphi 0, %s270
      %s288 = sphi 0, %s288
      %s290 = sphi 0, %s288
      %s291 = sphi 0, %s290
      %s305 = sphi 0, %s291
      %s309 = sphi 0, %s309
      %s311 = sphi 0, %s309
      %s312 = sphi 0, %s311
      %s326 = sphi 0, %s312
      %s332 = sphi 0, %s334
      %s335 = sphi 0, %s332
      %s336 = sphi 0, %s335
      %s352 = sphi 0, %s336
    $region4: #{tpu_custom_call.1} parent=1 // loop_header_branch
      %26 = sbr.rel (%p24) target = $region8
    $region5: #{tpu_custom_call.1} parent=1 // loop_body
      %s28 = ssub.s32 %s23, 1
      %s29 = ssub.s32 %s23, 2
      %s30 = sadd.s32 %s23, 1
      %s31 = ssub.s32 %s23, %s30
      %p32 = scmp.eq.s32.totalorder %s31, 0
      %s34 = sadd.s32 %s33, 1
      %s35 = scalar_select %p32, %s33, %s34
      %p38 = pneg %p32
      %p39 = scmp.eq.s32.totalorder %s23, 1
      %p40 = por %p38, %p39
      %p41 = scmp.ne.s32.totalorder %s33, %s36
      %p42 = scmp.eq.s32.totalorder %s23, 0
      %p43 = por %p41, %p42
      %p44 = scmp.ne.s32.totalorder %s33, %s36
      %p45 = scmp.eq.s32.totalorder %s28, 1
      %p46 = por %p44, %p45
      %p47 = scmp.ne.s32.totalorder %s36, %s37
      %p48 = scmp.eq.s32.totalorder %s28, 0
      %p49 = por %p47, %p48
      %p50 = scmp.ne.s32.totalorder %s36, %s37
      %p51 = scmp.eq.s32.totalorder %s29, 1
      %p52 = por %p50, %p51
      %p54 = scmp.ne.s32.totalorder %s37, %s53
      %p55 = scmp.eq.s32.totalorder %s29, 0
      %p56 = por %p54, %p55
      %s58 = sadd.s32 %s57, 1
      %p61 = scmp.eq.s32.totalorder %s23, 1
      %p62 = scmp.ne.s32.totalorder %s57, %s59
      %p63 = scmp.eq.s32.totalorder %s23, 0
      %p64 = por %p62, %p63
      %p65 = scmp.ne.s32.totalorder %s57, %s59
      %p66 = scmp.eq.s32.totalorder %s28, 1
      %p67 = por %p65, %p66
      %p68 = scmp.ne.s32.totalorder %s59, %s60
      %p69 = scmp.eq.s32.totalorder %s28, 0
      %p70 = por %p68, %p69
      %p71 = scmp.ne.s32.totalorder %s59, %s60
      %p72 = scmp.eq.s32.totalorder %s29, 1
      %p73 = por %p71, %p72
      %p75 = scmp.ne.s32.totalorder %s60, %s74
      %p76 = scmp.eq.s32.totalorder %s29, 0
      %p77 = por %p75, %p76
      %s79 = sadd.s32 %s78, 1
      %p82 = scmp.eq.s32.totalorder %s23, 1
      %p83 = scmp.ne.s32.totalorder %s78, %s80
      %p84 = scmp.eq.s32.totalorder %s23, 0
      %p85 = por %p83, %p84
      %p86 = scmp.ne.s32.totalorder %s78, %s80
      %p87 = scmp.eq.s32.totalorder %s28, 1
      %p88 = por %p86, %p87
      %p89 = scmp.ne.s32.totalorder %s80, %s81
      %p90 = scmp.eq.s32.totalorder %s28, 0
      %p91 = por %p89, %p90
      %p92 = scmp.ne.s32.totalorder %s80, %s81
      %p93 = scmp.eq.s32.totalorder %s29, 1
      %p94 = por %p92, %p93
      %p96 = scmp.ne.s32.totalorder %s81, %s95
      %p97 = scmp.eq.s32.totalorder %s29, 0
      %p98 = por %p96, %p97
      %s100 = sadd.s32 %s99, 1
      %p103 = scmp.eq.s32.totalorder %s23, 1
      %p104 = scmp.ne.s32.totalorder %s99, %s101
      %p105 = scmp.eq.s32.totalorder %s23, 0
      %p106 = por %p104, %p105
      %p107 = scmp.ne.s32.totalorder %s99, %s101
      %p108 = scmp.eq.s32.totalorder %s28, 1
      %p109 = por %p107, %p108
      %p110 = scmp.ne.s32.totalorder %s101, %s102
      %p111 = scmp.eq.s32.totalorder %s28, 0
      %p112 = por %p110, %p111
      %p113 = scmp.ne.s32.totalorder %s101, %s102
      %p114 = scmp.eq.s32.totalorder %s29, 1
      %p115 = por %p113, %p114
      %p117 = scmp.ne.s32.totalorder %s102, %s116
      %p118 = scmp.eq.s32.totalorder %s29, 0
      %p119 = por %p117, %p118
      %s121 = sadd.s32 %s120, 1
      %p124 = scmp.eq.s32.totalorder %s23, 1
      %p125 = scmp.ne.s32.totalorder %s120, %s122
      %p126 = scmp.eq.s32.totalorder %s23, 0
      %p127 = por %p125, %p126
      %p128 = scmp.ne.s32.totalorder %s120, %s122
      %p129 = scmp.eq.s32.totalorder %s28, 1
      %p130 = por %p128, %p129
      %p131 = scmp.ne.s32.totalorder %s122, %s123
      %p132 = scmp.eq.s32.totalorder %s28, 0
      %p133 = por %p131, %p132
      %p134 = scmp.ne.s32.totalorder %s122, %s123
      %p135 = scmp.eq.s32.totalorder %s29, 1
      %p136 = por %p134, %p135
      %p138 = scmp.ne.s32.totalorder %s123, %s137
      %p139 = scmp.eq.s32.totalorder %s29, 0
      %p140 = por %p138, %p139
      %s142 = sadd.s32 %s141, 1
      %p145 = scmp.eq.s32.totalorder %s23, 1
      %p146 = scmp.ne.s32.totalorder %s141, %s143
      %p147 = scmp.eq.s32.totalorder %s23, 0
      %p148 = por %p146, %p147
      %p149 = scmp.ne.s32.totalorder %s141, %s143
      %p150 = scmp.eq.s32.totalorder %s28, 1
      %p151 = por %p149, %p150
      %p152 = scmp.ne.s32.totalorder %s143, %s144
      %p153 = scmp.eq.s32.totalorder %s28, 0
      %p154 = por %p152, %p153
      %p155 = scmp.ne.s32.totalorder %s143, %s144
      %p156 = scmp.eq.s32.totalorder %s29, 1
      %p157 = por %p155, %p156
      %p159 = scmp.ne.s32.totalorder %s144, %s158
      %p160 = scmp.eq.s32.totalorder %s29, 0
      %p161 = por %p159, %p160
      %s163 = sadd.s32 %s162, 1
      %p166 = scmp.eq.s32.totalorder %s23, 1
      %p167 = scmp.ne.s32.totalorder %s162, %s164
      %p168 = scmp.eq.s32.totalorder %s23, 0
      %p169 = por %p167, %p168
      %p170 = scmp.ne.s32.totalorder %s162, %s164
      %p171 = scmp.eq.s32.totalorder %s28, 1
      %p172 = por %p170, %p171
      %p173 = scmp.ne.s32.totalorder %s164, %s165
      %p174 = scmp.eq.s32.totalorder %s28, 0
      %p175 = por %p173, %p174
      %p176 = scmp.ne.s32.totalorder %s164, %s165
      %p177 = scmp.eq.s32.totalorder %s29, 1
      %p178 = por %p176, %p177
      %p180 = scmp.ne.s32.totalorder %s165, %s179
      %p181 = scmp.eq.s32.totalorder %s29, 0
      %p182 = por %p180, %p181
      %s184 = sadd.s32 %s183, 1
      %p187 = scmp.eq.s32.totalorder %s23, 1
      %p188 = scmp.ne.s32.totalorder %s183, %s185
      %p189 = scmp.eq.s32.totalorder %s23, 0
      %p190 = por %p188, %p189
      %p191 = scmp.ne.s32.totalorder %s183, %s185
      %p192 = scmp.eq.s32.totalorder %s28, 1
      %p193 = por %p191, %p192
      %p194 = scmp.ne.s32.totalorder %s185, %s186
      %p195 = scmp.eq.s32.totalorder %s28, 0
      %p196 = por %p194, %p195
      %p197 = scmp.ne.s32.totalorder %s185, %s186
      %p198 = scmp.eq.s32.totalorder %s29, 1
      %p199 = por %p197, %p198
      %p201 = scmp.ne.s32.totalorder %s186, %s200
      %p202 = scmp.eq.s32.totalorder %s29, 0
      %p203 = por %p201, %p202
      %s205 = sadd.s32 %s204, 1
      %p208 = scmp.eq.s32.totalorder %s23, 1
      %p209 = scmp.ne.s32.totalorder %s204, %s206
      %p210 = scmp.eq.s32.totalorder %s23, 0
      %p211 = por %p209, %p210
      %p212 = scmp.ne.s32.totalorder %s204, %s206
      %p213 = scmp.eq.s32.totalorder %s28, 1
      %p214 = por %p212, %p213
      %p215 = scmp.ne.s32.totalorder %s206, %s207
      %p216 = scmp.eq.s32.totalorder %s28, 0
      %p217 = por %p215, %p216
      %p218 = scmp.ne.s32.totalorder %s206, %s207
      %p219 = scmp.eq.s32.totalorder %s29, 1
      %p220 = por %p218, %p219
      %p222 = scmp.ne.s32.totalorder %s207, %s221
      %p223 = scmp.eq.s32.totalorder %s29, 0
      %p224 = por %p222, %p223
      %s226 = sadd.s32 %s225, 1
      %p229 = scmp.eq.s32.totalorder %s23, 1
      %p230 = scmp.ne.s32.totalorder %s225, %s227
      %p231 = scmp.eq.s32.totalorder %s23, 0
      %p232 = por %p230, %p231
      %p233 = scmp.ne.s32.totalorder %s225, %s227
      %p234 = scmp.eq.s32.totalorder %s28, 1
      %p235 = por %p233, %p234
      %p236 = scmp.ne.s32.totalorder %s227, %s228
      %p237 = scmp.eq.s32.totalorder %s28, 0
      %p238 = por %p236, %p237
      %p239 = scmp.ne.s32.totalorder %s227, %s228
      %p240 = scmp.eq.s32.totalorder %s29, 1
      %p241 = por %p239, %p240
      %p243 = scmp.ne.s32.totalorder %s228, %s242
      %p244 = scmp.eq.s32.totalorder %s29, 0
      %p245 = por %p243, %p244
      %s247 = sadd.s32 %s246, 1
      %p250 = scmp.eq.s32.totalorder %s23, 1
      %p251 = scmp.ne.s32.totalorder %s246, %s248
      %p252 = scmp.eq.s32.totalorder %s23, 0
      %p253 = por %p251, %p252
      %p254 = scmp.ne.s32.totalorder %s246, %s248
      %p255 = scmp.eq.s32.totalorder %s28, 1
      %p256 = por %p254, %p255
      %p257 = scmp.ne.s32.totalorder %s248, %s249
      %p258 = scmp.eq.s32.totalorder %s28, 0
      %p259 = por %p257, %p258
      %p260 = scmp.ne.s32.totalorder %s248, %s249
      %p261 = scmp.eq.s32.totalorder %s29, 1
      %p262 = por %p260, %p261
      %p264 = scmp.ne.s32.totalorder %s249, %s263
      %p265 = scmp.eq.s32.totalorder %s29, 0
      %p266 = por %p264, %p265
      %s268 = sadd.s32 %s267, 1
      %p271 = scmp.eq.s32.totalorder %s23, 1
      %p272 = scmp.ne.s32.totalorder %s267, %s269
      %p273 = scmp.eq.s32.totalorder %s23, 0
      %p274 = por %p272, %p273
      %p275 = scmp.ne.s32.totalorder %s267, %s269
      %p276 = scmp.eq.s32.totalorder %s28, 1
      %p277 = por %p275, %p276
      %p278 = scmp.ne.s32.totalorder %s269, %s270
      %p279 = scmp.eq.s32.totalorder %s28, 0
      %p280 = por %p278, %p279
      %p281 = scmp.ne.s32.totalorder %s269, %s270
      %p282 = scmp.eq.s32.totalorder %s29, 1
      %p283 = por %p281, %p282
      %p285 = scmp.ne.s32.totalorder %s270, %s284
      %p286 = scmp.eq.s32.totalorder %s29, 0
      %p287 = por %p285, %p286
      %s289 = sadd.s32 %s288, 1
      %p292 = scmp.eq.s32.totalorder %s23, 1
      %p293 = scmp.ne.s32.totalorder %s288, %s290
      %p294 = scmp.eq.s32.totalorder %s23, 0
      %p295 = por %p293, %p294
      %p296 = scmp.ne.s32.totalorder %s288, %s290
      %p297 = scmp.eq.s32.totalorder %s28, 1
      %p298 = por %p296, %p297
      %p299 = scmp.ne.s32.totalorder %s290, %s291
      %p300 = scmp.eq.s32.totalorder %s28, 0
      %p301 = por %p299, %p300
      %p302 = scmp.ne.s32.totalorder %s290, %s291
      %p303 = scmp.eq.s32.totalorder %s29, 1
      %p304 = por %p302, %p303
      %p306 = scmp.ne.s32.totalorder %s291, %s305
      %p307 = scmp.eq.s32.totalorder %s29, 0
      %p308 = por %p306, %p307
      %s310 = sadd.s32 %s309, 1
      %p313 = scmp.eq.s32.totalorder %s23, 1
      %p314 = scmp.ne.s32.totalorder %s309, %s311
      %p315 = scmp.eq.s32.totalorder %s23, 0
      %p316 = por %p314, %p315
      %p317 = scmp.ne.s32.totalorder %s309, %s311
      %p318 = scmp.eq.s32.totalorder %s28, 1
      %p319 = por %p317, %p318
      %p320 = scmp.ne.s32.totalorder %s311, %s312
      %p321 = scmp.eq.s32.totalorder %s28, 0
      %p322 = por %p320, %p321
      %p323 = scmp.ne.s32.totalorder %s311, %s312
      %p324 = scmp.eq.s32.totalorder %s29, 1
      %p325 = por %p323, %p324
      %p327 = scmp.ne.s32.totalorder %s312, %s326
      %p328 = scmp.eq.s32.totalorder %s29, 0
      %p329 = por %p327, %p328
      %s330 = ssub.s32 %s23, %s30
      %p331 = scmp.eq.s32.totalorder %s330, 0
      %s333 = sadd.s32 %s332, 1
      %s334 = scalar_select %p331, %s332, %s333
      %p337 = pneg %p331
      %p338 = scmp.eq.s32.totalorder %s23, 1
      %p339 = por %p337, %p338
      %p340 = scmp.ne.s32.totalorder %s332, %s335
      %p341 = scmp.eq.s32.totalorder %s23, 0
      %p342 = por %p340, %p341
      %p343 = scmp.ne.s32.totalorder %s332, %s335
      %p344 = scmp.eq.s32.totalorder %s28, 1
      %p345 = por %p343, %p344
      %p346 = scmp.ne.s32.totalorder %s335, %s336
      %p347 = scmp.eq.s32.totalorder %s28, 0
      %p348 = por %p346, %p347
      %p349 = scmp.ne.s32.totalorder %s335, %s336
      %p350 = scmp.eq.s32.totalorder %s29, 1
      %p351 = por %p349, %p350
      %p353 = scmp.ne.s32.totalorder %s336, %s352
      %p354 = scmp.eq.s32.totalorder %s29, 0
      %p355 = por %p353, %p354
      %p356 = scmp.le.s32.totalorder 1, %s23
      %p357 = scmp.lt.s32.totalorder %s23, 3
      %p358 = pnand %p356, %p357
      %p359 = pneg %p358
      // Predicated region
      $region9: #{tpu_custom_call.1} parent=5 // pred_check
        _
      $region10: #{tpu_custom_call.1} parent=5 // pred_check_branch
        %361 = sbr.rel (%p358) target = $region12
      $region11: #{tpu_custom_call.1} parent=5 // pred_region
        %s362 = ssub.s32 %s23, 1
        // Predicated region
        $region13: #{tpu_custom_call.1} parent=11 // pred_check
          %p363 = pneg %p70
        $region14: #{tpu_custom_call.1} parent=11 // pred_check_branch
          %365 = sbr.rel (%p363) target = $region16
        $region15: #{tpu_custom_call.1} parent=11 // pred_region
          _
        $region16: #{tpu_custom_call.1} parent=11 // pred_fallthru
          _
        // Predicated region
        $region17: #{tpu_custom_call.1} parent=11 // pred_check
          %p366 = pneg %p91
        $region18: #{tpu_custom_call.1} parent=11 // pred_check_branch
          %368 = sbr.rel (%p366) target = $region20
        $region19: #{tpu_custom_call.1} parent=11 // pred_region
          _
        $region20: #{tpu_custom_call.1} parent=11 // pred_fallthru
          _
        // Predicated region
        $region21: #{tpu_custom_call.1} parent=11 // pred_check
          %p369 = pneg %p112
        $region22: #{tpu_custom_call.1} parent=11 // pred_check_branch
          %371 = sbr.rel (%p369) target = $region24
        $region23: #{tpu_custom_call.1} parent=11 // pred_region
          _
        $region24: #{tpu_custom_call.1} parent=11 // pred_fallthru
          _
        // Predicated region
        $region25: #{tpu_custom_call.1} parent=11 // pred_check
          %p372 = pneg %p133
        $region26: #{tpu_custom_call.1} parent=11 // pred_check_branch
          %374 = sbr.rel (%p372) target = $region28
        $region27: #{tpu_custom_call.1} parent=11 // pred_region
          _
        $region28: #{tpu_custom_call.1} parent=11 // pred_fallthru
          _
        // Predicated region
        $region29: #{tpu_custom_call.1} parent=11 // pred_check
          %p375 = pneg %p154
        $region30: #{tpu_custom_call.1} parent=11 // pred_check_branch
          %377 = sbr.rel (%p375) target = $region32
        $region31: #{tpu_custom_call.1} parent=11 // pred_region
          _
        $region32: #{tpu_custom_call.1} parent=11 // pred_fallthru
          _
        // Predicated region
        $region33: #{tpu_custom_call.1} parent=11 // pred_check
          %p378 = pneg %p175
        $region34: #{tpu_custom_call.1} parent=11 // pred_check_branch
          %380 = sbr.rel (%p378) target = $region36
        $region35: #{tpu_custom_call.1} parent=11 // pred_region
          _
        $region36: #{tpu_custom_call.1} parent=11 // pred_fallthru
          _
        // Predicated region
        $region37: #{tpu_custom_call.1} parent=11 // pred_check
          %p381 = pneg %p196
        $region38: #{tpu_custom_call.1} parent=11 // pred_check_branch
          %383 = sbr.rel (%p381) target = $region40
        $region39: #{tpu_custom_call.1} parent=11 // pred_region
          _
        $region40: #{tpu_custom_call.1} parent=11 // pred_fallthru
          _
        // Predicated region
        $region41: #{tpu_custom_call.1} parent=11 // pred_check
          %p384 = pneg %p217
        $region42: #{tpu_custom_call.1} parent=11 // pred_check_branch
          %386 = sbr.rel (%p384) target = $region44
        $region43: #{tpu_custom_call.1} parent=11 // pred_region
          _
        $region44: #{tpu_custom_call.1} parent=11 // pred_fallthru
          _
        // Predicated region
        $region45: #{tpu_custom_call.1} parent=11 // pred_check
          %p387 = pneg %p238
        $region46: #{tpu_custom_call.1} parent=11 // pred_check_branch
          %389 = sbr.rel (%p387) target = $region48
        $region47: #{tpu_custom_call.1} parent=11 // pred_region
          _
        $region48: #{tpu_custom_call.1} parent=11 // pred_fallthru
          _
        // Predicated region
        $region49: #{tpu_custom_call.1} parent=11 // pred_check
          %p390 = pneg %p259
        $region50: #{tpu_custom_call.1} parent=11 // pred_check_branch
          %392 = sbr.rel (%p390) target = $region52
        $region51: #{tpu_custom_call.1} parent=11 // pred_region
          _
        $region52: #{tpu_custom_call.1} parent=11 // pred_fallthru
          _
        // Predicated region
        $region53: #{tpu_custom_call.1} parent=11 // pred_check
          %p393 = pneg %p280
        $region54: #{tpu_custom_call.1} parent=11 // pred_check_branch
          %395 = sbr.rel (%p393) target = $region56
        $region55: #{tpu_custom_call.1} parent=11 // pred_region
          _
        $region56: #{tpu_custom_call.1} parent=11 // pred_fallthru
          _
        // Predicated region
        $region57: #{tpu_custom_call.1} parent=11 // pred_check
          %p396 = pneg %p301
        $region58: #{tpu_custom_call.1} parent=11 // pred_check_branch
          %398 = sbr.rel (%p396) target = $region60
        $region59: #{tpu_custom_call.1} parent=11 // pred_region
          _
        $region60: #{tpu_custom_call.1} parent=11 // pred_fallthru
          _
        // Predicated region
        $region61: #{tpu_custom_call.1} parent=11 // pred_check
          %p399 = pneg %p322
        $region62: #{tpu_custom_call.1} parent=11 // pred_check_branch
          %401 = sbr.rel (%p399) target = $region64
        $region63: #{tpu_custom_call.1} parent=11 // pred_region
          _
        $region64: #{tpu_custom_call.1} parent=11 // pred_fallthru
          _
      $region12: #{tpu_custom_call.1} parent=5 // pred_fallthru
        _
      %p402 = scmp.lt.s32.totalorder %s23, 2
      // Predicated region
      $region65: #{tpu_custom_call.1} parent=5 // pred_check
        %p403 = pneg %p402
      $region66: #{tpu_custom_call.1} parent=5 // pred_check_branch
        %405 = sbr.rel (%p403) target = $region68
      $region67: #{tpu_custom_call.1} parent=5 // pred_region
        // Predicated region
        $region69: #{tpu_custom_call.1} parent=67 // pred_check
          %p406 = pneg %p43
        $region70: #{tpu_custom_call.1} parent=67 // pred_check_branch
          %408 = sbr.rel (%p406) target = $region72
        $region71: #{tpu_custom_call.1} parent=67 // pred_region
          %p409 = scmp.lt.s32.totalorder %s23, 1
          %s410 = scalar_select %p409, %s23, 1
          %s411 = smul.addr %s410, 4
          %s412 = scalar_lea.vmem %s0, %s411
        $region72: #{tpu_custom_call.1} parent=67 // pred_fallthru
          _
      $region68: #{tpu_custom_call.1} parent=5 // pred_fallthru
        _
      %p413 = scmp.le.s32.totalorder 1, %s23
      %p414 = scmp.lt.s32.totalorder %s23, 3
      %p415 = pnand %p413, %p414
      %p416 = pneg %p415
      // Predicated region
      $region73: #{tpu_custom_call.1} parent=5 // pred_check
        _
      $region74: #{tpu_custom_call.1} parent=5 // pred_check_branch
        %418 = sbr.rel (%p415) target = $region76
      $region75: #{tpu_custom_call.1} parent=5 // pred_region
        %s419 = ssub.s32 %s23, 1
        %p420 = scmp.lt.s32.totalorder %s28, 1
        %s421 = scalar_select %p420, %s28, 1
        %s422 = smul.addr %s421, 4
        %s423 = scalar_lea.vmem %s0, %s422
        %p424 = pneg %p49
        %p425 = pneg %p46
        %p426 = pneg %p70
        %p427 = pneg %p67
        %p428 = pneg %p91
        %p429 = pneg %p88
        %p430 = pneg %p112
        %p431 = pneg %p109
        %p432 = pneg %p133
        %p433 = pneg %p130
        %p434 = pneg %p154
        %p435 = pneg %p151
        %p436 = pneg %p175
        %p437 = pneg %p172
        %p438 = pneg %p196
        %p439 = pneg %p193
        %p440 = pneg %p217
        %p441 = pneg %p214
        %p442 = pneg %p238
        %p443 = pneg %p235
        %p444 = pneg %p259
        %p445 = pneg %p256
        %p446 = pneg %p280
        %p447 = pneg %p277
        %p448 = pneg %p301
        %p449 = pneg %p298
        %p450 = pneg %p322
        %p451 = pneg %p319
        %p452 = pneg %p348
        %p453 = pneg %p345
        %s454 = sand.u32 %s335, 1
        %s455 = scalar_lea.sflag [#allocation3], %s454
        %s456 = sand.u32 %s335, 1
        %s457 = smul.addr %s456, 16
        %s458 = scalar_lea.vmem [#allocation2], %s457
        %p459 = scmp.lt.s32.totalorder %s28, 1
        %s460 = scalar_select %p459, %s28, 1
        %s461 = smul.addr %s460, 4
        %s462 = scalar_lea.vmem %s0, %s461
        %v463 = vld [vmem:[%s462] sm:$0xf]
        %v464 = vld [vmem:[%s1] sm:$0xff]
        %v465 = vld [vmem:[%s1 + $0x8] sm:$0xff]
        %v466 = vld [vmem:[%s2] sm:$0xff]
        %v467 = vld [vmem:[%s2 + $0x8] sm:$0xff]
        %469 = vset.pattern.permute.xlu0 0
        %470 = vperm.xlu0 %469, %v466
        %v471 = vpop.permute.xlu0 %470
        %474 = vset.pattern.permute.xlu0 0
        %475 = vperm.xlu0 %474, %v467
        %v476 = vpop.permute.xlu0 %475
        %vm478 = vcmask 31744
        %v480 = vsel %vm478, %v464, 0
        %v483 = vsel %vm478, %v465, 0
        %vm485 = vcmask 1043456
        %v487 = vsel %vm485, %v463, 0
        %489 = vmatprep.subr.mxu0 0.0
        %490 = vmatpush1.msra.mxu0 %v487
        %491 = vmatprep.subr.mxu0 0.0
        %492 = vmatpush1.msra.mxu0 0.0
        %493 = vmatprep.subr.mxu0 0.0
        %494 = vmatpush1.msra.mxu0 0.0
        %495 = vmatprep.subr.mxu0 0.0
        %496 = vmatpush1.msra.mxu0 0.0
        %497 = vmatprep.subr.mxu0 0.0
        %498 = vmatpush1.msra.mxu0 0.0
        %499 = vmatprep.subr.mxu0 0.0
        %500 = vmatpush1.msra.mxu0 0.0
        %501 = vmatprep.subr.mxu0 0.0
        %502 = vmatpush1.msra.mxu0 0.0
        %503 = vmatprep.subr.mxu0 0.0
        %504 = vmatpush1.msra.mxu0 0.0
        %505 = vmatprep.subr.mxu0 0.0
        %506 = vmatpush1.msra.mxu0 0.0
        %507 = vmatprep.subr.mxu0 0.0
        %508 = vmatpush1.msra.mxu0 0.0
        %509 = vmatprep.subr.mxu0 0.0
        %510 = vmatpush1.msra.mxu0 0.0
        %511 = vmatprep.subr.mxu0 0.0
        %512 = vmatpush1.msra.mxu0 0.0
        %513 = vmatprep.subr.mxu0 0.0
        %514 = vmatpush1.msra.mxu0 0.0
        %515 = vmatprep.subr.mxu0 0.0
        %516 = vmatpush1.msra.mxu0 0.0
        %517 = vmatprep.subr.mxu0 0.0
        %518 = vmatpush1.msra.mxu0 0.0
        %519 = vmatprep.subr.mxu0 0.0
        %520 = vmatpush1.msra.mxu0 0.0
        %521 = vmatprep.subr.mxu0 0.0
        %522 = vmatpush1.msra.mxu0 0.0
        %523 = vmatprep.subr.mxu0 0.0
        %524 = vmatpush1.msra.mxu0 0.0
        %525 = vmatprep.subr.mxu0 0.0
        %526 = vmatpush1.msra.mxu0 0.0
        %527 = vmatprep.subr.mxu0 0.0
        %528 = vmatpush1.msra.mxu0 0.0
        %529 = vmatprep.subr.mxu0 0.0
        %530 = vmatpush1.msra.mxu0 0.0
        %531 = vmatprep.subr.mxu0 0.0
        %532 = vmatpush1.msra.mxu0 0.0
        %533 = vmatprep.subr.mxu0 0.0
        %534 = vmatpush1.msra.mxu0 0.0
        %535 = vmatprep.subr.mxu0 0.0
        %536 = vmatpush1.msra.mxu0 0.0
        %537 = vmatprep.subr.mxu0 0.0
        %538 = vmatpush1.msra.mxu0 0.0
        %539 = vmatprep.subr.mxu0 0.0
        %540 = vmatpush1.msra.mxu0 0.0
        %541 = vmatprep.subr.mxu0 0.0
        %542 = vmatpush1.msra.mxu0 0.0
        %543 = vmatprep.subr.mxu0 0.0
        %544 = vmatpush1.msra.mxu0 0.0
        %545 = vmatprep.subr.mxu0 0.0
        %546 = vmatpush1.msra.mxu0 0.0
        %547 = vmatprep.subr.mxu0 0.0
        %548 = vmatpush1.msra.mxu0 0.0
        %549 = vmatprep.subr.mxu0 0.0
        %550 = vmatpush1.msra.mxu0 0.0
        %551 = vmatprep.subr.mxu0 0.0
        %552 = vmatpush1.msra.mxu0 0.0
        %553 = vmatprep.mubr.f32.mxu0 0.0
        %554 = vmatmul.mubr.f32.gmra.mrb[0].mxu0 %v480
        %v555 = vpop.f32.mrb[0].mxu0
        %v556 = vadd.f32 %v471, %v555
        %v557 = vpop.f32.mrb[0].mxu0
        %558 = vmatprep.mubr.f32.mxu0 0.0
        %559 = vmatmul.mubr.f32.gmra.mrb[0].mxu0 %v483
        %v560 = vpop.f32.mrb[0].mxu0
        %v561 = vadd.f32 %v476, %v560
        %v562 = vpop.f32.mrb[0].mxu0
        %563 = vdwg.mxu0
        %v564 = vmax.f32 %v556, 0.0
        %v565 = vmax.f32 %v561, 0.0
        %v566 = vld [vmem:[%s3] sm:$0xff]
        %v567 = vld [vmem:[%s3 + $0x8] sm:$0xff]
        %v568 = vld [vmem:[%s3 + $0x10] sm:$0xff]
        %v569 = vld [vmem:[%s3 + $0x18] sm:$0xff]
        %v570 = vld [vmem:[%s4] sm:$0xff]
        %v571 = vld [vmem:[%s4 + $0x8] sm:$0xff]
        %v572 = vld [vmem:[%s4 + $0x10] sm:$0xff]
        %v573 = vld [vmem:[%s4 + $0x18] sm:$0xff]
        %575 = vset.pattern.permute.xlu0 0
        %576 = vperm.xlu0 %575, %v570
        %v577 = vpop.permute.xlu0 %576
        %580 = vset.pattern.permute.xlu0 0
        %581 = vperm.xlu0 %580, %v571
        %v582 = vpop.permute.xlu0 %581
        %585 = vset.pattern.permute.xlu0 0
        %586 = vperm.xlu0 %585, %v572
        %v587 = vpop.permute.xlu0 %586
        %590 = vset.pattern.permute.xlu0 0
        %591 = vperm.xlu0 %590, %v573
        %v592 = vpop.permute.xlu0 %591
        %vm594 = vcmask 130048
        %v596 = vsel %vm594, %v566, 0
        %v599 = vsel %vm594, %v567, 0
        %v602 = vsel %vm594, %v568, 0
        %v605 = vsel %vm594, %v569, 0
        %607 = vmatprep.subr.mxu0 0.0
        %608 = vmatpush1.msra.mxu0 %v564
        %609 = vmatprep.subr.mxu0 0.0
        %610 = vmatpush1.msra.mxu0 %v565
        %611 = vmatprep.subr.mxu0 0.0
        %612 = vmatpush1.msra.mxu0 0.0
        %613 = vmatprep.subr.mxu0 0.0
        %614 = vmatpush1.msra.mxu0 0.0
        %615 = vmatprep.subr.mxu0 0.0
        %616 = vmatpush1.msra.mxu0 0.0
        %617 = vmatprep.subr.mxu0 0.0
        %618 = vmatpush1.msra.mxu0 0.0
        %619 = vmatprep.subr.mxu0 0.0
        %620 = vmatpush1.msra.mxu0 0.0
        %621 = vmatprep.subr.mxu0 0.0
        %622 = vmatpush1.msra.mxu0 0.0
        %623 = vmatprep.subr.mxu0 0.0
        %624 = vmatpush1.msra.mxu0 0.0
        %625 = vmatprep.subr.mxu0 0.0
        %626 = vmatpush1.msra.mxu0 0.0
        %627 = vmatprep.subr.mxu0 0.0
        %628 = vmatpush1.msra.mxu0 0.0
        %629 = vmatprep.subr.mxu0 0.0
        %630 = vmatpush1.msra.mxu0 0.0
        %631 = vmatprep.subr.mxu0 0.0
        %632 = vmatpush1.msra.mxu0 0.0
        %633 = vmatprep.subr.mxu0 0.0
        %634 = vmatpush1.msra.mxu0 0.0
        %635 = vmatprep.subr.mxu0 0.0
        %636 = vmatpush1.msra.mxu0 0.0
        %637 = vmatprep.subr.mxu0 0.0
        %638 = vmatpush1.msra.mxu0 0.0
        %639 = vmatprep.subr.mxu0 0.0
        %640 = vmatpush1.msra.mxu0 0.0
        %641 = vmatprep.subr.mxu0 0.0
        %642 = vmatpush1.msra.mxu0 0.0
        %643 = vmatprep.subr.mxu0 0.0
        %644 = vmatpush1.msra.mxu0 0.0
        %645 = vmatprep.subr.mxu0 0.0
        %646 = vmatpush1.msra.mxu0 0.0
        %647 = vmatprep.subr.mxu0 0.0
        %648 = vmatpush1.msra.mxu0 0.0
        %649 = vmatprep.subr.mxu0 0.0
        %650 = vmatpush1.msra.mxu0 0.0
        %651 = vmatprep.subr.mxu0 0.0
        %652 = vmatpush1.msra.mxu0 0.0
        %653 = vmatprep.subr.mxu0 0.0
        %654 = vmatpush1.msra.mxu0 0.0
        %655 = vmatprep.subr.mxu0 0.0
        %656 = vmatpush1.msra.mxu0 0.0
        %657 = vmatprep.subr.mxu0 0.0
        %658 = vmatpush1.msra.mxu0 0.0
        %659 = vmatprep.subr.mxu0 0.0
        %660 = vmatpush1.msra.mxu0 0.0
        %661 = vmatprep.subr.mxu0 0.0
        %662 = vmatpush1.msra.mxu0 0.0
        %663 = vmatprep.subr.mxu0 0.0
        %664 = vmatpush1.msra.mxu0 0.0
        %665 = vmatprep.subr.mxu0 0.0
        %666 = vmatpush1.msra.mxu0 0.0
        %667 = vmatprep.subr.mxu0 0.0
        %668 = vmatpush1.msra.mxu0 0.0
        %669 = vmatprep.subr.mxu0 0.0
        %670 = vmatpush1.msra.mxu0 0.0
        %671 = vmatprep.mubr.f32.mxu0 0.0
        %672 = vmatmul.mubr.f32.gmra.mrb[0].mxu0 %v596
        %v673 = vpop.f32.mrb[0].mxu0
        %v674 = vadd.f32 %v577, %v673
        %v675 = vpop.f32.mrb[0].mxu0
        %676 = vmatprep.mubr.f32.mxu0 0.0
        %677 = vmatmul.mubr.f32.gmra.mrb[0].mxu0 %v599
        %v678 = vpop.f32.mrb[0].mxu0
        %v679 = vadd.f32 %v582, %v678
        %v680 = vpop.f32.mrb[0].mxu0
        %681 = vmatprep.mubr.f32.mxu0 0.0
        %682 = vmatmul.mubr.f32.gmra.mrb[0].mxu0 %v602
        %v683 = vpop.f32.mrb[0].mxu0
        %v684 = vadd.f32 %v587, %v683
        %v685 = vpop.f32.mrb[0].mxu0
        %686 = vmatprep.mubr.f32.mxu0 0.0
        %687 = vmatmul.mubr.f32.gmra.mrb[0].mxu0 %v605
        %v688 = vpop.f32.mrb[0].mxu0
        %v689 = vadd.f32 %v592, %v688
        %v690 = vpop.f32.mrb[0].mxu0
        %691 = vdwg.mxu0
        %v692 = vmax.f32 %v674, 0.0
        %v693 = vmax.f32 %v679, 0.0
        %v694 = vmax.f32 %v684, 0.0
        %v695 = vmax.f32 %v689, 0.0
        %v696 = vld [vmem:[%s5] sm:$0xff]
        %v697 = vld [vmem:[%s5 + $0x8] sm:$0xff]
        %v698 = vld [vmem:[%s5 + $0x10] sm:$0xff]
        %v699 = vld [vmem:[%s5 + $0x18] sm:$0xff]
        %v700 = vld [vmem:[%s5 + $0x20] sm:$0xff]
        %v701 = vld [vmem:[%s5 + $0x28] sm:$0xff]
        %v702 = vld [vmem:[%s5 + $0x30] sm:$0xff]
        %v703 = vld [vmem:[%s5 + $0x38] sm:$0xff]
        %v704 = vld [vmem:[%s6] sm:$0xff]
        %v705 = vld [vmem:[%s6 + $0x8] sm:$0xff]
        %v706 = vld [vmem:[%s6 + $0x10] sm:$0xff]
        %v707 = vld [vmem:[%s6 + $0x18] sm:$0xff]
        %v708 = vld [vmem:[%s6 + $0x20] sm:$0xff]
        %v709 = vld [vmem:[%s6 + $0x28] sm:$0xff]
        %v710 = vld [vmem:[%s6 + $0x30] sm:$0xff]
        %v711 = vld [vmem:[%s6 + $0x38] sm:$0xff]
        %713 = vset.pattern.permute.xlu0 0
        %714 = vperm.xlu0 %713, %v704
        %v715 = vpop.permute.xlu0 %714
        %718 = vset.pattern.permute.xlu0 0
        %719 = vperm.xlu0 %718, %v705
        %v720 = vpop.permute.xlu0 %719
        %723 = vset.pattern.permute.xlu0 0
        %724 = vperm.xlu0 %723, %v706
        %v725 = vpop.permute.xlu0 %724
        %728 = vset.pattern.permute.xlu0 0
        %729 = vperm.xlu0 %728, %v707
        %v730 = vpop.permute.xlu0 %729
        %733 = vset.pattern.permute.xlu0 0
        %734 = vperm.xlu0 %733, %v708
        %v735 = vpop.permute.xlu0 %734
        %738 = vset.pattern.permute.xlu0 0
        %739 = vperm.xlu0 %738, %v709
        %v740 = vpop.permute.xlu0 %739
        %743 = vset.pattern.permute.xlu0 0
        %744 = vperm.xlu0 %743, %v710
        %v745 = vpop.permute.xlu0 %744
        %748 = vset.pattern.permute.xlu0 0
        %749 = vperm.xlu0 %748, %v711
        %v750 = vpop.permute.xlu0 %749
        %vm752 = vcmask 261120
        %v754 = vsel %vm752, %v696, 0
        %v757 = vsel %vm752, %v697, 0
        %v760 = vsel %vm752, %v698, 0
        %v763 = vsel %vm752, %v699, 0
        %v766 = vsel %vm752, %v700, 0
        %v769 = vsel %vm752, %v701, 0
        %v772 = vsel %vm752, %v702, 0
        %v775 = vsel %vm752, %v703, 0
        %777 = vmatprep.subr.mxu0 0.0
        %778 = vmatpush1.msra.mxu0 %v692
        %779 = vmatprep.subr.mxu0 0.0
        %780 = vmatpush1.msra.mxu0 %v693
        %781 = vmatprep.subr.mxu0 0.0
        %782 = vmatpush1.msra.mxu0 %v694
        %783 = vmatprep.subr.mxu0 0.0
        %784 = vmatpush1.msra.mxu0 %v695
        %785 = vmatprep.subr.mxu0 0.0
        %786 = vmatpush1.msra.mxu0 0.0
        %787 = vmatprep.subr.mxu0 0.0
        %788 = vmatpush1.msra.mxu0 0.0
        %789 = vmatprep.subr.mxu0 0.0
        %790 = vmatpush1.msra.mxu0 0.0
        %791 = vmatprep.subr.mxu0 0.0
        %792 = vmatpush1.msra.mxu0 0.0
        %793 = vmatprep.subr.mxu0 0.0
        %794 = vmatpush1.msra.mxu0 0.0
        %795 = vmatprep.subr.mxu0 0.0
        %796 = vmatpush1.msra.mxu0 0.0
        %797 = vmatprep.subr.mxu0 0.0
        %798 = vmatpush1.msra.mxu0 0.0
        %799 = vmatprep.subr.mxu0 0.0
        %800 = vmatpush1.msra.mxu0 0.0
        %801 = vmatprep.subr.mxu0 0.0
        %802 = vmatpush1.msra.mxu0 0.0
        %803 = vmatprep.subr.mxu0 0.0
        %804 = vmatpush1.msra.mxu0 0.0
        %805 = vmatprep.subr.mxu0 0.0
        %806 = vmatpush1.msra.mxu0 0.0
        %807 = vmatprep.subr.mxu0 0.0
        %808 = vmatpush1.msra.mxu0 0.0
        %809 = vmatprep.subr.mxu0 0.0
        %810 = vmatpush1.msra.mxu0 0.0
        %811 = vmatprep.subr.mxu0 0.0
        %812 = vmatpush1.msra.mxu0 0.0
        %813 = vmatprep.subr.mxu0 0.0
        %814 = vmatpush1.msra.mxu0 0.0
        %815 = vmatprep.subr.mxu0 0.0
        %816 = vmatpush1.msra.mxu0 0.0
        %817 = vmatprep.subr.mxu0 0.0
        %818 = vmatpush1.msra.mxu0 0.0
        %819 = vmatprep.subr.mxu0 0.0
        %820 = vmatpush1.msra.mxu0 0.0
        %821 = vmatprep.subr.mxu0 0.0
        %822 = vmatpush1.msra.mxu0 0.0
        %823 = vmatprep.subr.mxu0 0.0
        %824 = vmatpush1.msra.mxu0 0.0
        %825 = vmatprep.subr.mxu0 0.0
        %826 = vmatpush1.msra.mxu0 0.0
        %827 = vmatprep.subr.mxu0 0.0
        %828 = vmatpush1.msra.mxu0 0.0
        %829 = vmatprep.subr.mxu0 0.0
        %830 = vmatpush1.msra.mxu0 0.0
        %831 = vmatprep.subr.mxu0 0.0
        %832 = vmatpush1.msra.mxu0 0.0
        %833 = vmatprep.subr.mxu0 0.0
        %834 = vmatpush1.msra.mxu0 0.0
        %835 = vmatprep.subr.mxu0 0.0
        %836 = vmatpush1.msra.mxu0 0.0
        %837 = vmatprep.subr.mxu0 0.0
        %838 = vmatpush1.msra.mxu0 0.0
        %839 = vmatprep.subr.mxu0 0.0
        %840 = vmatpush1.msra.mxu0 0.0
        %841 = vmatprep.mubr.f32.mxu0 0.0
        %842 = vmatmul.mubr.f32.gmra.mrb[0].mxu0 %v754
        %v843 = vpop.f32.mrb[0].mxu0
        %v844 = vadd.f32 %v715, %v843
        %v845 = vpop.f32.mrb[0].mxu0
        %846 = vmatprep.mubr.f32.mxu0 0.0
        %847 = vmatmul.mubr.f32.gmra.mrb[0].mxu0 %v757
        %v848 = vpop.f32.mrb[0].mxu0
        %v849 = vadd.f32 %v720, %v848
        %v850 = vpop.f32.mrb[0].mxu0
        %851 = vmatprep.mubr.f32.mxu0 0.0
        %852 = vmatmul.mubr.f32.gmra.mrb[0].mxu0 %v760
        %v853 = vpop.f32.mrb[0].mxu0
        %v854 = vadd.f32 %v725, %v853
        %v855 = vpop.f32.mrb[0].mxu0
        %856 = vmatprep.mubr.f32.mxu0 0.0
        %857 = vmatmul.mubr.f32.gmra.mrb[0].mxu0 %v763
        %v858 = vpop.f32.mrb[0].mxu0
        %v859 = vadd.f32 %v730, %v858
        %v860 = vpop.f32.mrb[0].mxu0
        %861 = vmatprep.mubr.f32.mxu0 0.0
        %862 = vmatmul.mubr.f32.gmra.mrb[0].mxu0 %v766
        %v863 = vpop.f32.mrb[0].mxu0
        %v864 = vadd.f32 %v735, %v863
        %v865 = vpop.f32.mrb[0].mxu0
        %866 = vmatprep.mubr.f32.mxu0 0.0
        %867 = vmatmul.mubr.f32.gmra.mrb[0].mxu0 %v769
        %v868 = vpop.f32.mrb[0].mxu0
        %v869 = vadd.f32 %v740, %v868
        %v870 = vpop.f32.mrb[0].mxu0
        %871 = vmatprep.mubr.f32.mxu0 0.0
        %872 = vmatmul.mubr.f32.gmra.mrb[0].mxu0 %v772
        %v873 = vpop.f32.mrb[0].mxu0
        %v874 = vadd.f32 %v745, %v873
        %v875 = vpop.f32.mrb[0].mxu0
        %876 = vmatprep.mubr.f32.mxu0 0.0
        %877 = vmatmul.mubr.f32.gmra.mrb[0].mxu0 %v775
        %v878 = vpop.f32.mrb[0].mxu0
        %v879 = vadd.f32 %v750, %v878
        %v880 = vpop.f32.mrb[0].mxu0
        %881 = vdwg.mxu0
        %v882 = vmax.f32 %v844, 0.0
        %v883 = vmax.f32 %v849, 0.0
        %v884 = vmax.f32 %v854, 0.0
        %v885 = vmax.f32 %v859, 0.0
        %v886 = vmax.f32 %v864, 0.0
        %v887 = vmax.f32 %v869, 0.0
        %v888 = vmax.f32 %v874, 0.0
        %v889 = vmax.f32 %v879, 0.0
        %890 = vmax.xlane.f32.xlu0 %v882
        %v891 = vpop.xlane.xlu0 %890
        %892 = vmax.xlane.f32.xlu0 %v883
        %v893 = vpop.xlane.xlu0 %892
        %894 = vmax.xlane.f32.xlu0 %v884
        %v895 = vpop.xlane.xlu0 %894
        %896 = vmax.xlane.f32.xlu0 %v885
        %v897 = vpop.xlane.xlu0 %896
        %898 = vmax.xlane.f32.xlu0 %v886
        %v899 = vpop.xlane.xlu0 %898
        %900 = vmax.xlane.f32.xlu0 %v887
        %v901 = vpop.xlane.xlu0 %900
        %902 = vmax.xlane.f32.xlu0 %v888
        %v903 = vpop.xlane.xlu0 %902
        %904 = vmax.xlane.f32.xlu0 %v889
        %v905 = vpop.xlane.xlu0 %904
        %910 = vrot.lane.b32.xlu0 %v692, 120
        %v911 = vpop.permute.xlu0 %910
        %912 = vrot.lane.b32.xlu0 %v693, 120
        %v913 = vpop.permute.xlu0 %912
        %914 = vrot.lane.b32.xlu0 %v694, 120
        %v915 = vpop.permute.xlu0 %914
        %916 = vrot.lane.b32.xlu0 %v695, 120
        %v917 = vpop.permute.xlu0 %916
        %922 = vrot.lane.b32.xlu0 %v692, 112
        %v923 = vpop.permute.xlu0 %922
        %924 = vrot.lane.b32.xlu0 %v693, 112
        %v925 = vpop.permute.xlu0 %924
        %926 = vrot.lane.b32.xlu0 %v694, 112
        %v927 = vpop.permute.xlu0 %926
        %928 = vrot.lane.b32.xlu0 %v695, 112
        %v929 = vpop.permute.xlu0 %928
        %934 = vrot.lane.b32.xlu0 %v692, 104
        %v935 = vpop.permute.xlu0 %934
        %936 = vrot.lane.b32.xlu0 %v693, 104
        %v937 = vpop.permute.xlu0 %936
        %938 = vrot.lane.b32.xlu0 %v694, 104
        %v939 = vpop.permute.xlu0 %938
        %940 = vrot.lane.b32.xlu0 %v695, 104
        %v941 = vpop.permute.xlu0 %940
        %946 = vrot.lane.b32.xlu0 %v692, 96
        %v947 = vpop.permute.xlu0 %946
        %948 = vrot.lane.b32.xlu0 %v693, 96
        %v949 = vpop.permute.xlu0 %948
        %950 = vrot.lane.b32.xlu0 %v694, 96
        %v951 = vpop.permute.xlu0 %950
        %952 = vrot.lane.b32.xlu0 %v695, 96
        %v953 = vpop.permute.xlu0 %952
        %958 = vrot.lane.b32.xlu0 %v692, 88
        %v959 = vpop.permute.xlu0 %958
        %960 = vrot.lane.b32.xlu0 %v693, 88
        %v961 = vpop.permute.xlu0 %960
        %962 = vrot.lane.b32.xlu0 %v694, 88
        %v963 = vpop.permute.xlu0 %962
        %964 = vrot.lane.b32.xlu0 %v695, 88
        %v965 = vpop.permute.xlu0 %964
        %970 = vrot.lane.b32.xlu0 %v692, 80
        %v971 = vpop.permute.xlu0 %970
        %972 = vrot.lane.b32.xlu0 %v693, 80
        %v973 = vpop.permute.xlu0 %972
        %974 = vrot.lane.b32.xlu0 %v694, 80
        %v975 = vpop.permute.xlu0 %974
        %976 = vrot.lane.b32.xlu0 %v695, 80
        %v977 = vpop.permute.xlu0 %976
        %982 = vrot.lane.b32.xlu0 %v692, 72
        %v983 = vpop.permute.xlu0 %982
        %984 = vrot.lane.b32.xlu0 %v693, 72
        %v985 = vpop.permute.xlu0 %984
        %986 = vrot.lane.b32.xlu0 %v694, 72
        %v987 = vpop.permute.xlu0 %986
        %988 = vrot.lane.b32.xlu0 %v695, 72
        %v989 = vpop.permute.xlu0 %988
        %994 = vrot.lane.b32.xlu0 %v692, 64
        %v995 = vpop.permute.xlu0 %994
        %996 = vrot.lane.b32.xlu0 %v693, 64
        %v997 = vpop.permute.xlu0 %996
        %998 = vrot.lane.b32.xlu0 %v694, 64
        %v999 = vpop.permute.xlu0 %998
        %1000 = vrot.lane.b32.xlu0 %v695, 64
        %v1001 = vpop.permute.xlu0 %1000
        %1006 = vrot.lane.b32.xlu0 %v692, 56
        %v1007 = vpop.permute.xlu0 %1006
        %1008 = vrot.lane.b32.xlu0 %v693, 56
        %v1009 = vpop.permute.xlu0 %1008
        %1010 = vrot.lane.b32.xlu0 %v694, 56
        %v1011 = vpop.permute.xlu0 %1010
        %1012 = vrot.lane.b32.xlu0 %v695, 56
        %v1013 = vpop.permute.xlu0 %1012
        %1018 = vrot.lane.b32.xlu0 %v692, 48
        %v1019 = vpop.permute.xlu0 %1018
        %1020 = vrot.lane.b32.xlu0 %v693, 48
        %v1021 = vpop.permute.xlu0 %1020
        %1022 = vrot.lane.b32.xlu0 %v694, 48
        %v1023 = vpop.permute.xlu0 %1022
        %1024 = vrot.lane.b32.xlu0 %v695, 48
        %v1025 = vpop.permute.xlu0 %1024
        %1030 = vrot.lane.b32.xlu0 %v692, 40
        %v1031 = vpop.permute.xlu0 %1030
        %1032 = vrot.lane.b32.xlu0 %v693, 40
        %v1033 = vpop.permute.xlu0 %1032
        %1034 = vrot.lane.b32.xlu0 %v694, 40
        %v1035 = vpop.permute.xlu0 %1034
        %1036 = vrot.lane.b32.xlu0 %v695, 40
        %v1037 = vpop.permute.xlu0 %1036
        %1042 = vrot.lane.b32.xlu0 %v692, 32
        %v1043 = vpop.permute.xlu0 %1042
        %1044 = vrot.lane.b32.xlu0 %v693, 32
        %v1045 = vpop.permute.xlu0 %1044
        %1046 = vrot.lane.b32.xlu0 %v694, 32
        %v1047 = vpop.permute.xlu0 %1046
        %1048 = vrot.lane.b32.xlu0 %v695, 32
        %v1049 = vpop.permute.xlu0 %1048
        %1054 = vrot.lane.b32.xlu0 %v692, 24
        %v1055 = vpop.permute.xlu0 %1054
        %1056 = vrot.lane.b32.xlu0 %v693, 24
        %v1057 = vpop.permute.xlu0 %1056
        %1058 = vrot.lane.b32.xlu0 %v694, 24
        %v1059 = vpop.permute.xlu0 %1058
        %1060 = vrot.lane.b32.xlu0 %v695, 24
        %v1061 = vpop.permute.xlu0 %1060
        %1066 = vrot.lane.b32.xlu0 %v692, 16
        %v1067 = vpop.permute.xlu0 %1066
        %1068 = vrot.lane.b32.xlu0 %v693, 16
        %v1069 = vpop.permute.xlu0 %1068
        %1070 = vrot.lane.b32.xlu0 %v694, 16
        %v1071 = vpop.permute.xlu0 %1070
        %1072 = vrot.lane.b32.xlu0 %v695, 16
        %v1073 = vpop.permute.xlu0 %1072
        %1078 = vrot.lane.b32.xlu0 %v692, 8
        %v1079 = vpop.permute.xlu0 %1078
        %1080 = vrot.lane.b32.xlu0 %v693, 8
        %v1081 = vpop.permute.xlu0 %1080
        %1082 = vrot.lane.b32.xlu0 %v694, 8
        %v1083 = vpop.permute.xlu0 %1082
        %1084 = vrot.lane.b32.xlu0 %v695, 8
        %v1085 = vpop.permute.xlu0 %1084
        %v1090 = vcombine.low %v692, %v923
        %v1091 = vcombine.high %v692, %v923
        %v1093 = vunpack.c.l.s4 1983009808
        %v1094 = vunpack.c.0.s8 %v1093
        %v1095 = vlaneseq
        %v1096 = vshrl.u32 %v1095, 7
        %v1097 = vsub.s32 %v1094, %v1096
        %v1098 = vrot.slane %v1090, %v1097
        %v1100 = vunpack.c.l.s4 1983009808
        %v1101 = vunpack.c.0.s8 %v1100
        %v1102 = vlaneseq
        %v1103 = vshrl.u32 %v1102, 7
        %v1104 = vsub.s32 %v1101, %v1103
        %v1105 = vrot.slane %v1091, %v1104
        %v1106 = vcombine.low %v911, %v935
        %v1107 = vcombine.high %v911, %v935
        %v1109 = vunpack.c.l.s4 1983009808
        %v1110 = vunpack.c.0.s8 %v1109
        %v1111 = vlaneseq
        %v1112 = vshrl.u32 %v1111, 7
        %v1113 = vsub.s32 %v1110, %v1112
        %v1114 = vrot.slane %v1106, %v1113
        %v1116 = vunpack.c.l.s4 1983009808
        %v1117 = vunpack.c.0.s8 %v1116
        %v1118 = vlaneseq
        %v1119 = vshrl.u32 %v1118, 7
        %v1120 = vsub.s32 %v1117, %v1119
        %v1121 = vrot.slane %v1107, %v1120
        %v1122 = vcombine.low %v947, %v971
        %v1123 = vcombine.high %v947, %v971
        %v1125 = vunpack.c.l.s4 1983009808
        %v1126 = vunpack.c.0.s8 %v1125
        %v1127 = vlaneseq
        %v1128 = vshrl.u32 %v1127, 7
        %v1129 = vsub.s32 %v1126, %v1128
        %v1130 = vrot.slane %v1122, %v1129
        %v1132 = vunpack.c.l.s4 1983009808
        %v1133 = vunpack.c.0.s8 %v1132
        %v1134 = vlaneseq
        %v1135 = vshrl.u32 %v1134, 7
        %v1136 = vsub.s32 %v1133, %v1135
        %v1137 = vrot.slane %v1123, %v1136
        %v1138 = vcombine.low %v959, %v983
        %v1139 = vcombine.high %v959, %v983
        %v1141 = vunpack.c.l.s4 1983009808
        %v1142 = vunpack.c.0.s8 %v1141
        %v1143 = vlaneseq
        %v1144 = vshrl.u32 %v1143, 7
        %v1145 = vsub.s32 %v1142, %v1144
        %v1146 = vrot.slane %v1138, %v1145
        %v1148 = vunpack.c.l.s4 1983009808
        %v1149 = vunpack.c.0.s8 %v1148
        %v1150 = vlaneseq
        %v1151 = vshrl.u32 %v1150, 7
        %v1152 = vsub.s32 %v1149, %v1151
        %v1153 = vrot.slane %v1139, %v1152
        %v1154 = vcombine.low %v1098, %v1114
        %v1155 = vcombine.high %v1098, %v1114
        %v1157 = vunpack.c.l.s4 1934713408
        %v1158 = vunpack.c.0.s8 %v1157
        %v1159 = vlaneseq
        %v1160 = vshrl.u32 %v1159, 7
        %v1161 = vsub.s32 %v1158, %v1160
        %v1162 = vrot.slane %v1154, %v1161
        %v1164 = vunpack.c.l.s4 1934713408
        %v1165 = vunpack.c.0.s8 %v1164
        %v1166 = vlaneseq
        %v1167 = vshrl.u32 %v1166, 7
        %v1168 = vsub.s32 %v1165, %v1167
        %v1169 = vrot.slane %v1155, %v1168
        %v1170 = vcombine.low %v1105, %v1121
        %v1171 = vcombine.high %v1105, %v1121
        %v1173 = vunpack.c.l.s4 1934713408
        %v1174 = vunpack.c.0.s8 %v1173
        %v1175 = vlaneseq
        %v1176 = vshrl.u32 %v1175, 7
        %v1177 = vsub.s32 %v1174, %v1176
        %v1178 = vrot.slane %v1170, %v1177
        %v1180 = vunpack.c.l.s4 1934713408
        %v1181 = vunpack.c.0.s8 %v1180
        %v1182 = vlaneseq
        %v1183 = vshrl.u32 %v1182, 7
        %v1184 = vsub.s32 %v1181, %v1183
        %v1185 = vrot.slane %v1171, %v1184
        %v1186 = vcombine.low %v1130, %v1146
        %v1187 = vcombine.high %v1130, %v1146
        %v1189 = vunpack.c.l.s4 1934713408
        %v1190 = vunpack.c.0.s8 %v1189
        %v1191 = vlaneseq
        %v1192 = vshrl.u32 %v1191, 7
        %v1193 = vsub.s32 %v1190, %v1192
        %v1194 = vrot.slane %v1186, %v1193
        %v1196 = vunpack.c.l.s4 1934713408
        %v1197 = vunpack.c.0.s8 %v1196
        %v1198 = vlaneseq
        %v1199 = vshrl.u32 %v1198, 7
        %v1200 = vsub.s32 %v1197, %v1199
        %v1201 = vrot.slane %v1187, %v1200
        %v1202 = vcombine.low %v1137, %v1153
        %v1203 = vcombine.high %v1137, %v1153
        %v1205 = vunpack.c.l.s4 1934713408
        %v1206 = vunpack.c.0.s8 %v1205
        %v1207 = vlaneseq
        %v1208 = vshrl.u32 %v1207, 7
        %v1209 = vsub.s32 %v1206, %v1208
        %v1210 = vrot.slane %v1202, %v1209
        %v1212 = vunpack.c.l.s4 1934713408
        %v1213 = vunpack.c.0.s8 %v1212
        %v1214 = vlaneseq
        %v1215 = vshrl.u32 %v1214, 7
        %v1216 = vsub.s32 %v1213, %v1215
        %v1217 = vrot.slane %v1203, %v1216
        %v1218 = vcombine.low %v1162, %v1194
        %v1219 = vcombine.high %v1162, %v1194
        %v1220 = vcombine.low %v1169, %v1201
        %v1221 = vcombine.high %v1169, %v1201
        %v1222 = vcombine.low %v1178, %v1210
        %v1223 = vcombine.high %v1178, %v1210
        %v1224 = vcombine.low %v1185, %v1217
        %v1225 = vcombine.high %v1185, %v1217
        %v1226 = vcombine.low %v995, %v1019
        %v1227 = vcombine.high %v995, %v1019
        %v1229 = vunpack.c.l.s4 1983009808
        %v1230 = vunpack.c.0.s8 %v1229
        %v1231 = vlaneseq
        %v1232 = vshrl.u32 %v1231, 7
        %v1233 = vsub.s32 %v1230, %v1232
        %v1234 = vrot.slane %v1226, %v1233
        %v1236 = vunpack.c.l.s4 1983009808
        %v1237 = vunpack.c.0.s8 %v1236
        %v1238 = vlaneseq
        %v1239 = vshrl.u32 %v1238, 7
        %v1240 = vsub.s32 %v1237, %v1239
        %v1241 = vrot.slane %v1227, %v1240
        %v1242 = vcombine.low %v1007, %v1031
        %v1243 = vcombine.high %v1007, %v1031
        %v1245 = vunpack.c.l.s4 1983009808
        %v1246 = vunpack.c.0.s8 %v1245
        %v1247 = vlaneseq
        %v1248 = vshrl.u32 %v1247, 7
        %v1249 = vsub.s32 %v1246, %v1248
        %v1250 = vrot.slane %v1242, %v1249
        %v1252 = vunpack.c.l.s4 1983009808
        %v1253 = vunpack.c.0.s8 %v1252
        %v1254 = vlaneseq
        %v1255 = vshrl.u32 %v1254, 7
        %v1256 = vsub.s32 %v1253, %v1255
        %v1257 = vrot.slane %v1243, %v1256
        %v1258 = vcombine.low %v1043, %v1067
        %v1259 = vcombine.high %v1043, %v1067
        %v1261 = vunpack.c.l.s4 1983009808
        %v1262 = vunpack.c.0.s8 %v1261
        %v1263 = vlaneseq
        %v1264 = vshrl.u32 %v1263, 7
        %v1265 = vsub.s32 %v1262, %v1264
        %v1266 = vrot.slane %v1258, %v1265
        %v1268 = vunpack.c.l.s4 1983009808
        %v1269 = vunpack.c.0.s8 %v1268
        %v1270 = vlaneseq
        %v1271 = vshrl.u32 %v1270, 7
        %v1272 = vsub.s32 %v1269, %v1271
        %v1273 = vrot.slane %v1259, %v1272
        %v1274 = vcombine.low %v1055, %v1079
        %v1275 = vcombine.high %v1055, %v1079
        %v1277 = vunpack.c.l.s4 1983009808
        %v1278 = vunpack.c.0.s8 %v1277
        %v1279 = vlaneseq
        %v1280 = vshrl.u32 %v1279, 7
        %v1281 = vsub.s32 %v1278, %v1280
        %v1282 = vrot.slane %v1274, %v1281
        %v1284 = vunpack.c.l.s4 1983009808
        %v1285 = vunpack.c.0.s8 %v1284
        %v1286 = vlaneseq
        %v1287 = vshrl.u32 %v1286, 7
        %v1288 = vsub.s32 %v1285, %v1287
        %v1289 = vrot.slane %v1275, %v1288
        %v1290 = vcombine.low %v1234, %v1250
        %v1291 = vcombine.high %v1234, %v1250
        %v1293 = vunpack.c.l.s4 1934713408
        %v1294 = vunpack.c.0.s8 %v1293
        %v1295 = vlaneseq
        %v1296 = vshrl.u32 %v1295, 7
        %v1297 = vsub.s32 %v1294, %v1296
        %v1298 = vrot.slane %v1290, %v1297
        %v1300 = vunpack.c.l.s4 1934713408
        %v1301 = vunpack.c.0.s8 %v1300
        %v1302 = vlaneseq
        %v1303 = vshrl.u32 %v1302, 7
        %v1304 = vsub.s32 %v1301, %v1303
        %v1305 = vrot.slane %v1291, %v1304
        %v1306 = vcombine.low %v1241, %v1257
        %v1307 = vcombine.high %v1241, %v1257
        %v1309 = vunpack.c.l.s4 1934713408
        %v1310 = vunpack.c.0.s8 %v1309
        %v1311 = vlaneseq
        %v1312 = vshrl.u32 %v1311, 7
        %v1313 = vsub.s32 %v1310, %v1312
        %v1314 = vrot.slane %v1306, %v1313
        %v1316 = vunpack.c.l.s4 1934713408
        %v1317 = vunpack.c.0.s8 %v1316
        %v1318 = vlaneseq
        %v1319 = vshrl.u32 %v1318, 7
        %v1320 = vsub.s32 %v1317, %v1319
        %v1321 = vrot.slane %v1307, %v1320
        %v1322 = vcombine.low %v1266, %v1282
        %v1323 = vcombine.high %v1266, %v1282
        %v1325 = vunpack.c.l.s4 1934713408
        %v1326 = vunpack.c.0.s8 %v1325
        %v1327 = vlaneseq
        %v1328 = vshrl.u32 %v1327, 7
        %v1329 = vsub.s32 %v1326, %v1328
        %v1330 = vrot.slane %v1322, %v1329
        %v1332 = vunpack.c.l.s4 1934713408
        %v1333 = vunpack.c.0.s8 %v1332
        %v1334 = vlaneseq
        %v1335 = vshrl.u32 %v1334, 7
        %v1336 = vsub.s32 %v1333, %v1335
        %v1337 = vrot.slane %v1323, %v1336
        %v1338 = vcombine.low %v1273, %v1289
        %v1339 = vcombine.high %v1273, %v1289
        %v1341 = vunpack.c.l.s4 1934713408
        %v1342 = vunpack.c.0.s8 %v1341
        %v1343 = vlaneseq
        %v1344 = vshrl.u32 %v1343, 7
        %v1345 = vsub.s32 %v1342, %v1344
        %v1346 = vrot.slane %v1338, %v1345
        %v1348 = vunpack.c.l.s4 1934713408
        %v1349 = vunpack.c.0.s8 %v1348
        %v1350 = vlaneseq
        %v1351 = vshrl.u32 %v1350, 7
        %v1352 = vsub.s32 %v1349, %v1351
        %v1353 = vrot.slane %v1339, %v1352
        %v1354 = vcombine.low %v1298, %v1330
        %v1355 = vcombine.high %v1298, %v1330
        %v1356 = vcombine.low %v1305, %v1337
        %v1357 = vcombine.high %v1305, %v1337
        %v1358 = vcombine.low %v1314, %v1346
        %v1359 = vcombine.high %v1314, %v1346
        %v1360 = vcombine.low %v1321, %v1353
        %v1361 = vcombine.high %v1321, %v1353
        %v1362 = vcombine.low %v693, %v925
        %v1363 = vcombine.high %v693, %v925
        %v1365 = vunpack.c.l.s4 1983009808
        %v1366 = vunpack.c.0.s8 %v1365
        %v1367 = vlaneseq
        %v1368 = vshrl.u32 %v1367, 7
        %v1369 = vsub.s32 %v1366, %v1368
        %v1370 = vrot.slane %v1362, %v1369
        %v1372 = vunpack.c.l.s4 1983009808
        %v1373 = vunpack.c.0.s8 %v1372
        %v1374 = vlaneseq
        %v1375 = vshrl.u32 %v1374, 7
        %v1376 = vsub.s32 %v1373, %v1375
        %v1377 = vrot.slane %v1363, %v1376
        %v1378 = vcombine.low %v913, %v937
        %v1379 = vcombine.high %v913, %v937
        %v1381 = vunpack.c.l.s4 1983009808
        %v1382 = vunpack.c.0.s8 %v1381
        %v1383 = vlaneseq
        %v1384 = vshrl.u32 %v1383, 7
        %v1385 = vsub.s32 %v1382, %v1384
        %v1386 = vrot.slane %v1378, %v1385
        %v1388 = vunpack.c.l.s4 1983009808
        %v1389 = vunpack.c.0.s8 %v1388
        %v1390 = vlaneseq
        %v1391 = vshrl.u32 %v1390, 7
        %v1392 = vsub.s32 %v1389, %v1391
        %v1393 = vrot.slane %v1379, %v1392
        %v1394 = vcombine.low %v949, %v973
        %v1395 = vcombine.high %v949, %v973
        %v1397 = vunpack.c.l.s4 1983009808
        %v1398 = vunpack.c.0.s8 %v1397
        %v1399 = vlaneseq
        %v1400 = vshrl.u32 %v1399, 7
        %v1401 = vsub.s32 %v1398, %v1400
        %v1402 = vrot.slane %v1394, %v1401
        %v1404 = vunpack.c.l.s4 1983009808
        %v1405 = vunpack.c.0.s8 %v1404
        %v1406 = vlaneseq
        %v1407 = vshrl.u32 %v1406, 7
        %v1408 = vsub.s32 %v1405, %v1407
        %v1409 = vrot.slane %v1395, %v1408
        %v1410 = vcombine.low %v961, %v985
        %v1411 = vcombine.high %v961, %v985
        %v1413 = vunpack.c.l.s4 1983009808
        %v1414 = vunpack.c.0.s8 %v1413
        %v1415 = vlaneseq
        %v1416 = vshrl.u32 %v1415, 7
        %v1417 = vsub.s32 %v1414, %v1416
        %v1418 = vrot.slane %v1410, %v1417
        %v1420 = vunpack.c.l.s4 1983009808
        %v1421 = vunpack.c.0.s8 %v1420
        %v1422 = vlaneseq
        %v1423 = vshrl.u32 %v1422, 7
        %v1424 = vsub.s32 %v1421, %v1423
        %v1425 = vrot.slane %v1411, %v1424
        %v1426 = vcombine.low %v1370, %v1386
        %v1427 = vcombine.high %v1370, %v1386
        %v1429 = vunpack.c.l.s4 1934713408
        %v1430 = vunpack.c.0.s8 %v1429
        %v1431 = vlaneseq
        %v1432 = vshrl.u32 %v1431, 7
        %v1433 = vsub.s32 %v1430, %v1432
        %v1434 = vrot.slane %v1426, %v1433
        %v1436 = vunpack.c.l.s4 1934713408
        %v1437 = vunpack.c.0.s8 %v1436
        %v1438 = vlaneseq
        %v1439 = vshrl.u32 %v1438, 7
        %v1440 = vsub.s32 %v1437, %v1439
        %v1441 = vrot.slane %v1427, %v1440
        %v1442 = vcombine.low %v1377, %v1393
        %v1443 = vcombine.high %v1377, %v1393
        %v1445 = vunpack.c.l.s4 1934713408
        %v1446 = vunpack.c.0.s8 %v1445
        %v1447 = vlaneseq
        %v1448 = vshrl.u32 %v1447, 7
        %v1449 = vsub.s32 %v1446, %v1448
        %v1450 = vrot.slane %v1442, %v1449
        %v1452 = vunpack.c.l.s4 1934713408
        %v1453 = vunpack.c.0.s8 %v1452
        %v1454 = vlaneseq
        %v1455 = vshrl.u32 %v1454, 7
        %v1456 = vsub.s32 %v1453, %v1455
        %v1457 = vrot.slane %v1443, %v1456
        %v1458 = vcombine.low %v1402, %v1418
        %v1459 = vcombine.high %v1402, %v1418
        %v1461 = vunpack.c.l.s4 1934713408
        %v1462 = vunpack.c.0.s8 %v1461
        %v1463 = vlaneseq
        %v1464 = vshrl.u32 %v1463, 7
        %v1465 = vsub.s32 %v1462, %v1464
        %v1466 = vrot.slane %v1458, %v1465
        %v1468 = vunpack.c.l.s4 1934713408
        %v1469 = vunpack.c.0.s8 %v1468
        %v1470 = vlaneseq
        %v1471 = vshrl.u32 %v1470, 7
        %v1472 = vsub.s32 %v1469, %v1471
        %v1473 = vrot.slane %v1459, %v1472
        %v1474 = vcombine.low %v1409, %v1425
        %v1475 = vcombine.high %v1409, %v1425
        %v1477 = vunpack.c.l.s4 1934713408
        %v1478 = vunpack.c.0.s8 %v1477
        %v1479 = vlaneseq
        %v1480 = vshrl.u32 %v1479, 7
        %v1481 = vsub.s32 %v1478, %v1480
        %v1482 = vrot.slane %v1474, %v1481
        %v1484 = vunpack.c.l.s4 1934713408
        %v1485 = vunpack.c.0.s8 %v1484
        %v1486 = vlaneseq
        %v1487 = vshrl.u32 %v1486, 7
        %v1488 = vsub.s32 %v1485, %v1487
        %v1489 = vrot.slane %v1475, %v1488
        %v1490 = vcombine.low %v1434, %v1466
        %v1491 = vcombine.high %v1434, %v1466
        %v1492 = vcombine.low %v1441, %v1473
        %v1493 = vcombine.high %v1441, %v1473
        %v1494 = vcombine.low %v1450, %v1482
        %v1495 = vcombine.high %v1450, %v1482
        %v1496 = vcombine.low %v1457, %v1489
        %v1497 = vcombine.high %v1457, %v1489
        %v1498 = vcombine.low %v997, %v1021
        %v1499 = vcombine.high %v997, %v1021
        %v1501 = vunpack.c.l.s4 1983009808
        %v1502 = vunpack.c.0.s8 %v1501
        %v1503 = vlaneseq
        %v1504 = vshrl.u32 %v1503, 7
        %v1505 = vsub.s32 %v1502, %v1504
        %v1506 = vrot.slane %v1498, %v1505
        %v1508 = vunpack.c.l.s4 1983009808
        %v1509 = vunpack.c.0.s8 %v1508
        %v1510 = vlaneseq
        %v1511 = vshrl.u32 %v1510, 7
        %v1512 = vsub.s32 %v1509, %v1511
        %v1513 = vrot.slane %v1499, %v1512
        %v1514 = vcombine.low %v1009, %v1033
        %v1515 = vcombine.high %v1009, %v1033
        %v1517 = vunpack.c.l.s4 1983009808
        %v1518 = vunpack.c.0.s8 %v1517
        %v1519 = vlaneseq
        %v1520 = vshrl.u32 %v1519, 7
        %v1521 = vsub.s32 %v1518, %v1520
        %v1522 = vrot.slane %v1514, %v1521
        %v1524 = vunpack.c.l.s4 1983009808
        %v1525 = vunpack.c.0.s8 %v1524
        %v1526 = vlaneseq
        %v1527 = vshrl.u32 %v1526, 7
        %v1528 = vsub.s32 %v1525, %v1527
        %v1529 = vrot.slane %v1515, %v1528
        %v1530 = vcombine.low %v1045, %v1069
        %v1531 = vcombine.high %v1045, %v1069
        %v1533 = vunpack.c.l.s4 1983009808
        %v1534 = vunpack.c.0.s8 %v1533
        %v1535 = vlaneseq
        %v1536 = vshrl.u32 %v1535, 7
        %v1537 = vsub.s32 %v1534, %v1536
        %v1538 = vrot.slane %v1530, %v1537
        %v1540 = vunpack.c.l.s4 1983009808
        %v1541 = vunpack.c.0.s8 %v1540
        %v1542 = vlaneseq
        %v1543 = vshrl.u32 %v1542, 7
        %v1544 = vsub.s32 %v1541, %v1543
        %v1545 = vrot.slane %v1531, %v1544
        %v1546 = vcombine.low %v1057, %v1081
        %v1547 = vcombine.high %v1057, %v1081
        %v1549 = vunpack.c.l.s4 1983009808
        %v1550 = vunpack.c.0.s8 %v1549
        %v1551 = vlaneseq
        %v1552 = vshrl.u32 %v1551, 7
        %v1553 = vsub.s32 %v1550, %v1552
        %v1554 = vrot.slane %v1546, %v1553
        %v1556 = vunpack.c.l.s4 1983009808
        %v1557 = vunpack.c.0.s8 %v1556
        %v1558 = vlaneseq
        %v1559 = vshrl.u32 %v1558, 7
        %v1560 = vsub.s32 %v1557, %v1559
        %v1561 = vrot.slane %v1547, %v1560
        %v1562 = vcombine.low %v1506, %v1522
        %v1563 = vcombine.high %v1506, %v1522
        %v1565 = vunpack.c.l.s4 1934713408
        %v1566 = vunpack.c.0.s8 %v1565
        %v1567 = vlaneseq
        %v1568 = vshrl.u32 %v1567, 7
        %v1569 = vsub.s32 %v1566, %v1568
        %v1570 = vrot.slane %v1562, %v1569
        %v1572 = vunpack.c.l.s4 1934713408
        %v1573 = vunpack.c.0.s8 %v1572
        %v1574 = vlaneseq
        %v1575 = vshrl.u32 %v1574, 7
        %v1576 = vsub.s32 %v1573, %v1575
        %v1577 = vrot.slane %v1563, %v1576
        %v1578 = vcombine.low %v1513, %v1529
        %v1579 = vcombine.high %v1513, %v1529
        %v1581 = vunpack.c.l.s4 1934713408
        %v1582 = vunpack.c.0.s8 %v1581
        %v1583 = vlaneseq
        %v1584 = vshrl.u32 %v1583, 7
        %v1585 = vsub.s32 %v1582, %v1584
        %v1586 = vrot.slane %v1578, %v1585
        %v1588 = vunpack.c.l.s4 1934713408
        %v1589 = vunpack.c.0.s8 %v1588
        %v1590 = vlaneseq
        %v1591 = vshrl.u32 %v1590, 7
        %v1592 = vsub.s32 %v1589, %v1591
        %v1593 = vrot.slane %v1579, %v1592
        %v1594 = vcombine.low %v1538, %v1554
        %v1595 = vcombine.high %v1538, %v1554
        %v1597 = vunpack.c.l.s4 1934713408
        %v1598 = vunpack.c.0.s8 %v1597
        %v1599 = vlaneseq
        %v1600 = vshrl.u32 %v1599, 7
        %v1601 = vsub.s32 %v1598, %v1600
        %v1602 = vrot.slane %v1594, %v1601
        %v1604 = vunpack.c.l.s4 1934713408
        %v1605 = vunpack.c.0.s8 %v1604
        %v1606 = vlaneseq
        %v1607 = vshrl.u32 %v1606, 7
        %v1608 = vsub.s32 %v1605, %v1607
        %v1609 = vrot.slane %v1595, %v1608
        %v1610 = vcombine.low %v1545, %v1561
        %v1611 = vcombine.high %v1545, %v1561
        %v1613 = vunpack.c.l.s4 1934713408
        %v1614 = vunpack.c.0.s8 %v1613
        %v1615 = vlaneseq
        %v1616 = vshrl.u32 %v1615, 7
        %v1617 = vsub.s32 %v1614, %v1616
        %v1618 = vrot.slane %v1610, %v1617
        %v1620 = vunpack.c.l.s4 1934713408
        %v1621 = vunpack.c.0.s8 %v1620
        %v1622 = vlaneseq
        %v1623 = vshrl.u32 %v1622, 7
        %v1624 = vsub.s32 %v1621, %v1623
        %v1625 = vrot.slane %v1611, %v1624
        %v1626 = vcombine.low %v1570, %v1602
        %v1627 = vcombine.high %v1570, %v1602
        %v1628 = vcombine.low %v1577, %v1609
        %v1629 = vcombine.high %v1577, %v1609
        %v1630 = vcombine.low %v1586, %v1618
        %v1631 = vcombine.high %v1586, %v1618
        %v1632 = vcombine.low %v1593, %v1625
        %v1633 = vcombine.high %v1593, %v1625
        %v1634 = vcombine.low %v694, %v927
        %v1635 = vcombine.high %v694, %v927
        %v1637 = vunpack.c.l.s4 1983009808
        %v1638 = vunpack.c.0.s8 %v1637
        %v1639 = vlaneseq
        %v1640 = vshrl.u32 %v1639, 7
        %v1641 = vsub.s32 %v1638, %v1640
        %v1642 = vrot.slane %v1634, %v1641
        %v1644 = vunpack.c.l.s4 1983009808
        %v1645 = vunpack.c.0.s8 %v1644
        %v1646 = vlaneseq
        %v1647 = vshrl.u32 %v1646, 7
        %v1648 = vsub.s32 %v1645, %v1647
        %v1649 = vrot.slane %v1635, %v1648
        %v1650 = vcombine.low %v915, %v939
        %v1651 = vcombine.high %v915, %v939
        %v1653 = vunpack.c.l.s4 1983009808
        %v1654 = vunpack.c.0.s8 %v1653
        %v1655 = vlaneseq
        %v1656 = vshrl.u32 %v1655, 7
        %v1657 = vsub.s32 %v1654, %v1656
        %v1658 = vrot.slane %v1650, %v1657
        %v1660 = vunpack.c.l.s4 1983009808
        %v1661 = vunpack.c.0.s8 %v1660
        %v1662 = vlaneseq
        %v1663 = vshrl.u32 %v1662, 7
        %v1664 = vsub.s32 %v1661, %v1663
        %v1665 = vrot.slane %v1651, %v1664
        %v1666 = vcombine.low %v951, %v975
        %v1667 = vcombine.high %v951, %v975
        %v1669 = vunpack.c.l.s4 1983009808
        %v1670 = vunpack.c.0.s8 %v1669
        %v1671 = vlaneseq
        %v1672 = vshrl.u32 %v1671, 7
        %v1673 = vsub.s32 %v1670, %v1672
        %v1674 = vrot.slane %v1666, %v1673
        %v1676 = vunpack.c.l.s4 1983009808
        %v1677 = vunpack.c.0.s8 %v1676
        %v1678 = vlaneseq
        %v1679 = vshrl.u32 %v1678, 7
        %v1680 = vsub.s32 %v1677, %v1679
        %v1681 = vrot.slane %v1667, %v1680
        %v1682 = vcombine.low %v963, %v987
        %v1683 = vcombine.high %v963, %v987
        %v1685 = vunpack.c.l.s4 1983009808
        %v1686 = vunpack.c.0.s8 %v1685
        %v1687 = vlaneseq
        %v1688 = vshrl.u32 %v1687, 7
        %v1689 = vsub.s32 %v1686, %v1688
        %v1690 = vrot.slane %v1682, %v1689
        %v1692 = vunpack.c.l.s4 1983009808
        %v1693 = vunpack.c.0.s8 %v1692
        %v1694 = vlaneseq
        %v1695 = vshrl.u32 %v1694, 7
        %v1696 = vsub.s32 %v1693, %v1695
        %v1697 = vrot.slane %v1683, %v1696
        %v1698 = vcombine.low %v1642, %v1658
        %v1699 = vcombine.high %v1642, %v1658
        %v1701 = vunpack.c.l.s4 1934713408
        %v1702 = vunpack.c.0.s8 %v1701
        %v1703 = vlaneseq
        %v1704 = vshrl.u32 %v1703, 7
        %v1705 = vsub.s32 %v1702, %v1704
        %v1706 = vrot.slane %v1698, %v1705
        %v1708 = vunpack.c.l.s4 1934713408
        %v1709 = vunpack.c.0.s8 %v1708
        %v1710 = vlaneseq
        %v1711 = vshrl.u32 %v1710, 7
        %v1712 = vsub.s32 %v1709, %v1711
        %v1713 = vrot.slane %v1699, %v1712
        %v1714 = vcombine.low %v1649, %v1665
        %v1715 = vcombine.high %v1649, %v1665
        %v1717 = vunpack.c.l.s4 1934713408
        %v1718 = vunpack.c.0.s8 %v1717
        %v1719 = vlaneseq
        %v1720 = vshrl.u32 %v1719, 7
        %v1721 = vsub.s32 %v1718, %v1720
        %v1722 = vrot.slane %v1714, %v1721
        %v1724 = vunpack.c.l.s4 1934713408
        %v1725 = vunpack.c.0.s8 %v1724
        %v1726 = vlaneseq
        %v1727 = vshrl.u32 %v1726, 7
        %v1728 = vsub.s32 %v1725, %v1727
        %v1729 = vrot.slane %v1715, %v1728
        %v1730 = vcombine.low %v1674, %v1690
        %v1731 = vcombine.high %v1674, %v1690
        %v1733 = vunpack.c.l.s4 1934713408
        %v1734 = vunpack.c.0.s8 %v1733
        %v1735 = vlaneseq
        %v1736 = vshrl.u32 %v1735, 7
        %v1737 = vsub.s32 %v1734, %v1736
        %v1738 = vrot.slane %v1730, %v1737
        %v1740 = vunpack.c.l.s4 1934713408
        %v1741 = vunpack.c.0.s8 %v1740
        %v1742 = vlaneseq
        %v1743 = vshrl.u32 %v1742, 7
        %v1744 = vsub.s32 %v1741, %v1743
        %v1745 = vrot.slane %v1731, %v1744
        %v1746 = vcombine.low %v1681, %v1697
        %v1747 = vcombine.high %v1681, %v1697
        %v1749 = vunpack.c.l.s4 1934713408
        %v1750 = vunpack.c.0.s8 %v1749
        %v1751 = vlaneseq
        %v1752 = vshrl.u32 %v1751, 7
        %v1753 = vsub.s32 %v1750, %v1752
        %v1754 = vrot.slane %v1746, %v1753
        %v1756 = vunpack.c.l.s4 1934713408
        %v1757 = vunpack.c.0.s8 %v1756
        %v1758 = vlaneseq
        %v1759 = vshrl.u32 %v1758, 7
        %v1760 = vsub.s32 %v1757, %v1759
        %v1761 = vrot.slane %v1747, %v1760
        %v1762 = vcombine.low %v1706, %v1738
        %v1763 = vcombine.high %v1706, %v1738
        %v1764 = vcombine.low %v1713, %v1745
        %v1765 = vcombine.high %v1713, %v1745
        %v1766 = vcombine.low %v1722, %v1754
        %v1767 = vcombine.high %v1722, %v1754
        %v1768 = vcombine.low %v1729, %v1761
        %v1769 = vcombine.high %v1729, %v1761
        %v1770 = vcombine.low %v999, %v1023
        %v1771 = vcombine.high %v999, %v1023
        %v1773 = vunpack.c.l.s4 1983009808
        %v1774 = vunpack.c.0.s8 %v1773
        %v1775 = vlaneseq
        %v1776 = vshrl.u32 %v1775, 7
        %v1777 = vsub.s32 %v1774, %v1776
        %v1778 = vrot.slane %v1770, %v1777
        %v1780 = vunpack.c.l.s4 1983009808
        %v1781 = vunpack.c.0.s8 %v1780
        %v1782 = vlaneseq
        %v1783 = vshrl.u32 %v1782, 7
        %v1784 = vsub.s32 %v1781, %v1783
        %v1785 = vrot.slane %v1771, %v1784
        %v1786 = vcombine.low %v1011, %v1035
        %v1787 = vcombine.high %v1011, %v1035
        %v1789 = vunpack.c.l.s4 1983009808
        %v1790 = vunpack.c.0.s8 %v1789
        %v1791 = vlaneseq
        %v1792 = vshrl.u32 %v1791, 7
        %v1793 = vsub.s32 %v1790, %v1792
        %v1794 = vrot.slane %v1786, %v1793
        %v1796 = vunpack.c.l.s4 1983009808
        %v1797 = vunpack.c.0.s8 %v1796
        %v1798 = vlaneseq
        %v1799 = vshrl.u32 %v1798, 7
        %v1800 = vsub.s32 %v1797, %v1799
        %v1801 = vrot.slane %v1787, %v1800
        %v1802 = vcombine.low %v1047, %v1071
        %v1803 = vcombine.high %v1047, %v1071
        %v1805 = vunpack.c.l.s4 1983009808
        %v1806 = vunpack.c.0.s8 %v1805
        %v1807 = vlaneseq
        %v1808 = vshrl.u32 %v1807, 7
        %v1809 = vsub.s32 %v1806, %v1808
        %v1810 = vrot.slane %v1802, %v1809
        %v1812 = vunpack.c.l.s4 1983009808
        %v1813 = vunpack.c.0.s8 %v1812
        %v1814 = vlaneseq
        %v1815 = vshrl.u32 %v1814, 7
        %v1816 = vsub.s32 %v1813, %v1815
        %v1817 = vrot.slane %v1803, %v1816
        %v1818 = vcombine.low %v1059, %v1083
        %v1819 = vcombine.high %v1059, %v1083
        %v1821 = vunpack.c.l.s4 1983009808
        %v1822 = vunpack.c.0.s8 %v1821
        %v1823 = vlaneseq
        %v1824 = vshrl.u32 %v1823, 7
        %v1825 = vsub.s32 %v1822, %v1824
        %v1826 = vrot.slane %v1818, %v1825
        %v1828 = vunpack.c.l.s4 1983009808
        %v1829 = vunpack.c.0.s8 %v1828
        %v1830 = vlaneseq
        %v1831 = vshrl.u32 %v1830, 7
        %v1832 = vsub.s32 %v1829, %v1831
        %v1833 = vrot.slane %v1819, %v1832
        %v1834 = vcombine.low %v1778, %v1794
        %v1835 = vcombine.high %v1778, %v1794
        %v1837 = vunpack.c.l.s4 1934713408
        %v1838 = vunpack.c.0.s8 %v1837
        %v1839 = vlaneseq
        %v1840 = vshrl.u32 %v1839, 7
        %v1841 = vsub.s32 %v1838, %v1840
        %v1842 = vrot.slane %v1834, %v1841
        %v1844 = vunpack.c.l.s4 1934713408
        %v1845 = vunpack.c.0.s8 %v1844
        %v1846 = vlaneseq
        %v1847 = vshrl.u32 %v1846, 7
        %v1848 = vsub.s32 %v1845, %v1847
        %v1849 = vrot.slane %v1835, %v1848
        %v1850 = vcombine.low %v1785, %v1801
        %v1851 = vcombine.high %v1785, %v1801
        %v1853 = vunpack.c.l.s4 1934713408
        %v1854 = vunpack.c.0.s8 %v1853
        %v1855 = vlaneseq
        %v1856 = vshrl.u32 %v1855, 7
        %v1857 = vsub.s32 %v1854, %v1856
        %v1858 = vrot.slane %v1850, %v1857
        %v1860 = vunpack.c.l.s4 1934713408
        %v1861 = vunpack.c.0.s8 %v1860
        %v1862 = vlaneseq
        %v1863 = vshrl.u32 %v1862, 7
        %v1864 = vsub.s32 %v1861, %v1863
        %v1865 = vrot.slane %v1851, %v1864
        %v1866 = vcombine.low %v1810, %v1826
        %v1867 = vcombine.high %v1810, %v1826
        %v1869 = vunpack.c.l.s4 1934713408
        %v1870 = vunpack.c.0.s8 %v1869
        %v1871 = vlaneseq
        %v1872 = vshrl.u32 %v1871, 7
        %v1873 = vsub.s32 %v1870, %v1872
        %v1874 = vrot.slane %v1866, %v1873
        %v1876 = vunpack.c.l.s4 1934713408
        %v1877 = vunpack.c.0.s8 %v1876
        %v1878 = vlaneseq
        %v1879 = vshrl.u32 %v1878, 7
        %v1880 = vsub.s32 %v1877, %v1879
        %v1881 = vrot.slane %v1867, %v1880
        %v1882 = vcombine.low %v1817, %v1833
        %v1883 = vcombine.high %v1817, %v1833
        %v1885 = vunpack.c.l.s4 1934713408
        %v1886 = vunpack.c.0.s8 %v1885
        %v1887 = vlaneseq
        %v1888 = vshrl.u32 %v1887, 7
        %v1889 = vsub.s32 %v1886, %v1888
        %v1890 = vrot.slane %v1882, %v1889
        %v1892 = vunpack.c.l.s4 1934713408
        %v1893 = vunpack.c.0.s8 %v1892
        %v1894 = vlaneseq
        %v1895 = vshrl.u32 %v1894, 7
        %v1896 = vsub.s32 %v1893, %v1895
        %v1897 = vrot.slane %v1883, %v1896
        %v1898 = vcombine.low %v1842, %v1874
        %v1899 = vcombine.high %v1842, %v1874
        %v1900 = vcombine.low %v1849, %v1881
        %v1901 = vcombine.high %v1849, %v1881
        %v1902 = vcombine.low %v1858, %v1890
        %v1903 = vcombine.high %v1858, %v1890
        %v1904 = vcombine.low %v1865, %v1897
        %v1905 = vcombine.high %v1865, %v1897
        %v1906 = vcombine.low %v695, %v929
        %v1907 = vcombine.high %v695, %v929
        %v1909 = vunpack.c.l.s4 1983009808
        %v1910 = vunpack.c.0.s8 %v1909
        %v1911 = vlaneseq
        %v1912 = vshrl.u32 %v1911, 7
        %v1913 = vsub.s32 %v1910, %v1912
        %v1914 = vrot.slane %v1906, %v1913
        %v1916 = vunpack.c.l.s4 1983009808
        %v1917 = vunpack.c.0.s8 %v1916
        %v1918 = vlaneseq
        %v1919 = vshrl.u32 %v1918, 7
        %v1920 = vsub.s32 %v1917, %v1919
        %v1921 = vrot.slane %v1907, %v1920
        %v1922 = vcombine.low %v917, %v941
        %v1923 = vcombine.high %v917, %v941
        %v1925 = vunpack.c.l.s4 1983009808
        %v1926 = vunpack.c.0.s8 %v1925
        %v1927 = vlaneseq
        %v1928 = vshrl.u32 %v1927, 7
        %v1929 = vsub.s32 %v1926, %v1928
        %v1930 = vrot.slane %v1922, %v1929
        %v1932 = vunpack.c.l.s4 1983009808
        %v1933 = vunpack.c.0.s8 %v1932
        %v1934 = vlaneseq
        %v1935 = vshrl.u32 %v1934, 7
        %v1936 = vsub.s32 %v1933, %v1935
        %v1937 = vrot.slane %v1923, %v1936
        %v1938 = vcombine.low %v953, %v977
        %v1939 = vcombine.high %v953, %v977
        %v1941 = vunpack.c.l.s4 1983009808
        %v1942 = vunpack.c.0.s8 %v1941
        %v1943 = vlaneseq
        %v1944 = vshrl.u32 %v1943, 7
        %v1945 = vsub.s32 %v1942, %v1944
        %v1946 = vrot.slane %v1938, %v1945
        %v1948 = vunpack.c.l.s4 1983009808
        %v1949 = vunpack.c.0.s8 %v1948
        %v1950 = vlaneseq
        %v1951 = vshrl.u32 %v1950, 7
        %v1952 = vsub.s32 %v1949, %v1951
        %v1953 = vrot.slane %v1939, %v1952
        %v1954 = vcombine.low %v965, %v989
        %v1955 = vcombine.high %v965, %v989
        %v1957 = vunpack.c.l.s4 1983009808
        %v1958 = vunpack.c.0.s8 %v1957
        %v1959 = vlaneseq
        %v1960 = vshrl.u32 %v1959, 7
        %v1961 = vsub.s32 %v1958, %v1960
        %v1962 = vrot.slane %v1954, %v1961
        %v1964 = vunpack.c.l.s4 1983009808
        %v1965 = vunpack.c.0.s8 %v1964
        %v1966 = vlaneseq
        %v1967 = vshrl.u32 %v1966, 7
        %v1968 = vsub.s32 %v1965, %v1967
        %v1969 = vrot.slane %v1955, %v1968
        %v1970 = vcombine.low %v1914, %v1930
        %v1971 = vcombine.high %v1914, %v1930
        %v1973 = vunpack.c.l.s4 1934713408
        %v1974 = vunpack.c.0.s8 %v1973
        %v1975 = vlaneseq
        %v1976 = vshrl.u32 %v1975, 7
        %v1977 = vsub.s32 %v1974, %v1976
        %v1978 = vrot.slane %v1970, %v1977
        %v1980 = vunpack.c.l.s4 1934713408
        %v1981 = vunpack.c.0.s8 %v1980
        %v1982 = vlaneseq
        %v1983 = vshrl.u32 %v1982, 7
        %v1984 = vsub.s32 %v1981, %v1983
        %v1985 = vrot.slane %v1971, %v1984
        %v1986 = vcombine.low %v1921, %v1937
        %v1987 = vcombine.high %v1921, %v1937
        %v1989 = vunpack.c.l.s4 1934713408
        %v1990 = vunpack.c.0.s8 %v1989
        %v1991 = vlaneseq
        %v1992 = vshrl.u32 %v1991, 7
        %v1993 = vsub.s32 %v1990, %v1992
        %v1994 = vrot.slane %v1986, %v1993
        %v1996 = vunpack.c.l.s4 1934713408
        %v1997 = vunpack.c.0.s8 %v1996
        %v1998 = vlaneseq
        %v1999 = vshrl.u32 %v1998, 7
        %v2000 = vsub.s32 %v1997, %v1999
        %v2001 = vrot.slane %v1987, %v2000
        %v2002 = vcombine.low %v1946, %v1962
        %v2003 = vcombine.high %v1946, %v1962
        %v2005 = vunpack.c.l.s4 1934713408
        %v2006 = vunpack.c.0.s8 %v2005
        %v2007 = vlaneseq
        %v2008 = vshrl.u32 %v2007, 7
        %v2009 = vsub.s32 %v2006, %v2008
        %v2010 = vrot.slane %v2002, %v2009
        %v2012 = vunpack.c.l.s4 1934713408
        %v2013 = vunpack.c.0.s8 %v2012
        %v2014 = vlaneseq
        %v2015 = vshrl.u32 %v2014, 7
        %v2016 = vsub.s32 %v2013, %v2015
        %v2017 = vrot.slane %v2003, %v2016
        %v2018 = vcombine.low %v1953, %v1969
        %v2019 = vcombine.high %v1953, %v1969
        %v2021 = vunpack.c.l.s4 1934713408
        %v2022 = vunpack.c.0.s8 %v2021
        %v2023 = vlaneseq
        %v2024 = vshrl.u32 %v2023, 7
        %v2025 = vsub.s32 %v2022, %v2024
        %v2026 = vrot.slane %v2018, %v2025
        %v2028 = vunpack.c.l.s4 1934713408
        %v2029 = vunpack.c.0.s8 %v2028
        %v2030 = vlaneseq
        %v2031 = vshrl.u32 %v2030, 7
        %v2032 = vsub.s32 %v2029, %v2031
        %v2033 = vrot.slane %v2019, %v2032
        %v2034 = vcombine.low %v1978, %v2010
        %v2035 = vcombine.high %v1978, %v2010
        %v2036 = vcombine.low %v1985, %v2017
        %v2037 = vcombine.high %v1985, %v2017
        %v2038 = vcombine.low %v1994, %v2026
        %v2039 = vcombine.high %v1994, %v2026
        %v2040 = vcombine.low %v2001, %v2033
        %v2041 = vcombine.high %v2001, %v2033
        %v2042 = vcombine.low %v1001, %v1025
        %v2043 = vcombine.high %v1001, %v1025
        %v2045 = vunpack.c.l.s4 1983009808
        %v2046 = vunpack.c.0.s8 %v2045
        %v2047 = vlaneseq
        %v2048 = vshrl.u32 %v2047, 7
        %v2049 = vsub.s32 %v2046, %v2048
        %v2050 = vrot.slane %v2042, %v2049
        %v2052 = vunpack.c.l.s4 1983009808
        %v2053 = vunpack.c.0.s8 %v2052
        %v2054 = vlaneseq
        %v2055 = vshrl.u32 %v2054, 7
        %v2056 = vsub.s32 %v2053, %v2055
        %v2057 = vrot.slane %v2043, %v2056
        %v2058 = vcombine.low %v1013, %v1037
        %v2059 = vcombine.high %v1013, %v1037
        %v2061 = vunpack.c.l.s4 1983009808
        %v2062 = vunpack.c.0.s8 %v2061
        %v2063 = vlaneseq
        %v2064 = vshrl.u32 %v2063, 7
        %v2065 = vsub.s32 %v2062, %v2064
        %v2066 = vrot.slane %v2058, %v2065
        %v2068 = vunpack.c.l.s4 1983009808
        %v2069 = vunpack.c.0.s8 %v2068
        %v2070 = vlaneseq
        %v2071 = vshrl.u32 %v2070, 7
        %v2072 = vsub.s32 %v2069, %v2071
        %v2073 = vrot.slane %v2059, %v2072
        %v2074 = vcombine.low %v1049, %v1073
        %v2075 = vcombine.high %v1049, %v1073
        %v2077 = vunpack.c.l.s4 1983009808
        %v2078 = vunpack.c.0.s8 %v2077
        %v2079 = vlaneseq
        %v2080 = vshrl.u32 %v2079, 7
        %v2081 = vsub.s32 %v2078, %v2080
        %v2082 = vrot.slane %v2074, %v2081
        %v2084 = vunpack.c.l.s4 1983009808
        %v2085 = vunpack.c.0.s8 %v2084
        %v2086 = vlaneseq
        %v2087 = vshrl.u32 %v2086, 7
        %v2088 = vsub.s32 %v2085, %v2087
        %v2089 = vrot.slane %v2075, %v2088
        %v2090 = vcombine.low %v1061, %v1085
        %v2091 = vcombine.high %v1061, %v1085
        %v2093 = vunpack.c.l.s4 1983009808
        %v2094 = vunpack.c.0.s8 %v2093
        %v2095 = vlaneseq
        %v2096 = vshrl.u32 %v2095, 7
        %v2097 = vsub.s32 %v2094, %v2096
        %v2098 = vrot.slane %v2090, %v2097
        %v2100 = vunpack.c.l.s4 1983009808
        %v2101 = vunpack.c.0.s8 %v2100
        %v2102 = vlaneseq
        %v2103 = vshrl.u32 %v2102, 7
        %v2104 = vsub.s32 %v2101, %v2103
        %v2105 = vrot.slane %v2091, %v2104
        %v2106 = vcombine.low %v2050, %v2066
        %v2107 = vcombine.high %v2050, %v2066
        %v2109 = vunpack.c.l.s4 1934713408
        %v2110 = vunpack.c.0.s8 %v2109
        %v2111 = vlaneseq
        %v2112 = vshrl.u32 %v2111, 7
        %v2113 = vsub.s32 %v2110, %v2112
        %v2114 = vrot.slane %v2106, %v2113
        %v2116 = vunpack.c.l.s4 1934713408
        %v2117 = vunpack.c.0.s8 %v2116
        %v2118 = vlaneseq
        %v2119 = vshrl.u32 %v2118, 7
        %v2120 = vsub.s32 %v2117, %v2119
        %v2121 = vrot.slane %v2107, %v2120
        %v2122 = vcombine.low %v2057, %v2073
        %v2123 = vcombine.high %v2057, %v2073
        %v2125 = vunpack.c.l.s4 1934713408
        %v2126 = vunpack.c.0.s8 %v2125
        %v2127 = vlaneseq
        %v2128 = vshrl.u32 %v2127, 7
        %v2129 = vsub.s32 %v2126, %v2128
        %v2130 = vrot.slane %v2122, %v2129
        %v2132 = vunpack.c.l.s4 1934713408
        %v2133 = vunpack.c.0.s8 %v2132
        %v2134 = vlaneseq
        %v2135 = vshrl.u32 %v2134, 7
        %v2136 = vsub.s32 %v2133, %v2135
        %v2137 = vrot.slane %v2123, %v2136
        %v2138 = vcombine.low %v2082, %v2098
        %v2139 = vcombine.high %v2082, %v2098
        %v2141 = vunpack.c.l.s4 1934713408
        %v2142 = vunpack.c.0.s8 %v2141
        %v2143 = vlaneseq
        %v2144 = vshrl.u32 %v2143, 7
        %v2145 = vsub.s32 %v2142, %v2144
        %v2146 = vrot.slane %v2138, %v2145
        %v2148 = vunpack.c.l.s4 1934713408
        %v2149 = vunpack.c.0.s8 %v2148
        %v2150 = vlaneseq
        %v2151 = vshrl.u32 %v2150, 7
        %v2152 = vsub.s32 %v2149, %v2151
        %v2153 = vrot.slane %v2139, %v2152
        %v2154 = vcombine.low %v2089, %v2105
        %v2155 = vcombine.high %v2089, %v2105
        %v2157 = vunpack.c.l.s4 1934713408
        %v2158 = vunpack.c.0.s8 %v2157
        %v2159 = vlaneseq
        %v2160 = vshrl.u32 %v2159, 7
        %v2161 = vsub.s32 %v2158, %v2160
        %v2162 = vrot.slane %v2154, %v2161
        %v2164 = vunpack.c.l.s4 1934713408
        %v2165 = vunpack.c.0.s8 %v2164
        %v2166 = vlaneseq
        %v2167 = vshrl.u32 %v2166, 7
        %v2168 = vsub.s32 %v2165, %v2167
        %v2169 = vrot.slane %v2155, %v2168
        %v2170 = vcombine.low %v2114, %v2146
        %v2171 = vcombine.high %v2114, %v2146
        %v2172 = vcombine.low %v2121, %v2153
        %v2173 = vcombine.high %v2121, %v2153
        %v2174 = vcombine.low %v2130, %v2162
        %v2175 = vcombine.high %v2130, %v2162
        %v2176 = vcombine.low %v2137, %v2169
        %v2177 = vcombine.high %v2137, %v2169
        %vm2178 = vcmask 64512
        %v2179 = vsel %vm2178, %v1218, -inf
        %2180 = vmax.xlane.f32.xlu0 %v2179
        %v2181 = vpop.xlane.xlu0 %2180
        %v2182 = vsel %vm2178, %v1354, -inf
        %2183 = vmax.xlane.f32.xlu0 %v2182
        %v2184 = vpop.xlane.xlu0 %2183
        %v2185 = vsel %vm2178, %v1219, -inf
        %2186 = vmax.xlane.f32.xlu0 %v2185
        %v2187 = vpop.xlane.xlu0 %2186
        %v2188 = vsel %vm2178, %v1355, -inf
        %2189 = vmax.xlane.f32.xlu0 %v2188
        %v2190 = vpop.xlane.xlu0 %2189
        %v2191 = vsel %vm2178, %v1220, -inf
        %2192 = vmax.xlane.f32.xlu0 %v2191
        %v2193 = vpop.xlane.xlu0 %2192
        %v2194 = vsel %vm2178, %v1356, -inf
        %2195 = vmax.xlane.f32.xlu0 %v2194
        %v2196 = vpop.xlane.xlu0 %2195
        %v2197 = vsel %vm2178, %v1221, -inf
        %2198 = vmax.xlane.f32.xlu0 %v2197
        %v2199 = vpop.xlane.xlu0 %2198
        %v2200 = vsel %vm2178, %v1357, -inf
        %2201 = vmax.xlane.f32.xlu0 %v2200
        %v2202 = vpop.xlane.xlu0 %2201
        %v2203 = vsel %vm2178, %v1222, -inf
        %2204 = vmax.xlane.f32.xlu0 %v2203
        %v2205 = vpop.xlane.xlu0 %2204
        %v2206 = vsel %vm2178, %v1358, -inf
        %2207 = vmax.xlane.f32.xlu0 %v2206
        %v2208 = vpop.xlane.xlu0 %2207
        %v2209 = vsel %vm2178, %v1223, -inf
        %2210 = vmax.xlane.f32.xlu0 %v2209
        %v2211 = vpop.xlane.xlu0 %2210
        %v2212 = vsel %vm2178, %v1359, -inf
        %2213 = vmax.xlane.f32.xlu0 %v2212
        %v2214 = vpop.xlane.xlu0 %2213
        %v2215 = vsel %vm2178, %v1224, -inf
        %2216 = vmax.xlane.f32.xlu0 %v2215
        %v2217 = vpop.xlane.xlu0 %2216
        %v2218 = vsel %vm2178, %v1360, -inf
        %2219 = vmax.xlane.f32.xlu0 %v2218
        %v2220 = vpop.xlane.xlu0 %2219
        %v2221 = vsel %vm2178, %v1225, -inf
        %2222 = vmax.xlane.f32.xlu0 %v2221
        %v2223 = vpop.xlane.xlu0 %2222
        %v2224 = vsel %vm2178, %v1361, -inf
        %2225 = vmax.xlane.f32.xlu0 %v2224
        %v2226 = vpop.xlane.xlu0 %2225
        %v2227 = vsel %vm2178, %v1490, -inf
        %2228 = vmax.xlane.f32.xlu0 %v2227
        %v2229 = vpop.xlane.xlu0 %2228
        %v2230 = vsel %vm2178, %v1626, -inf
        %2231 = vmax.xlane.f32.xlu0 %v2230
        %v2232 = vpop.xlane.xlu0 %2231
        %v2233 = vsel %vm2178, %v1491, -inf
        %2234 = vmax.xlane.f32.xlu0 %v2233
        %v2235 = vpop.xlane.xlu0 %2234
        %v2236 = vsel %vm2178, %v1627, -inf
        %2237 = vmax.xlane.f32.xlu0 %v2236
        %v2238 = vpop.xlane.xlu0 %2237
        %v2239 = vsel %vm2178, %v1492, -inf
        %2240 = vmax.xlane.f32.xlu0 %v2239
        %v2241 = vpop.xlane.xlu0 %2240
        %v2242 = vsel %vm2178, %v1628, -inf
        %2243 = vmax.xlane.f32.xlu0 %v2242
        %v2244 = vpop.xlane.xlu0 %2243
        %v2245 = vsel %vm2178, %v1493, -inf
        %2246 = vmax.xlane.f32.xlu0 %v2245
        %v2247 = vpop.xlane.xlu0 %2246
        %v2248 = vsel %vm2178, %v1629, -inf
        %2249 = vmax.xlane.f32.xlu0 %v2248
        %v2250 = vpop.xlane.xlu0 %2249
        %v2251 = vsel %vm2178, %v1494, -inf
        %2252 = vmax.xlane.f32.xlu0 %v2251
        %v2253 = vpop.xlane.xlu0 %2252
        %v2254 = vsel %vm2178, %v1630, -inf
        %2255 = vmax.xlane.f32.xlu0 %v2254
        %v2256 = vpop.xlane.xlu0 %2255
        %v2257 = vsel %vm2178, %v1495, -inf
        %2258 = vmax.xlane.f32.xlu0 %v2257
        %v2259 = vpop.xlane.xlu0 %2258
        %v2260 = vsel %vm2178, %v1631, -inf
        %2261 = vmax.xlane.f32.xlu0 %v2260
        %v2262 = vpop.xlane.xlu0 %2261
        %v2263 = vsel %vm2178, %v1496, -inf
        %2264 = vmax.xlane.f32.xlu0 %v2263
        %v2265 = vpop.xlane.xlu0 %2264
        %v2266 = vsel %vm2178, %v1632, -inf
        %2267 = vmax.xlane.f32.xlu0 %v2266
        %v2268 = vpop.xlane.xlu0 %2267
        %v2269 = vsel %vm2178, %v1497, -inf
        %2270 = vmax.xlane.f32.xlu0 %v2269
        %v2271 = vpop.xlane.xlu0 %2270
        %v2272 = vsel %vm2178, %v1633, -inf
        %2273 = vmax.xlane.f32.xlu0 %v2272
        %v2274 = vpop.xlane.xlu0 %2273
        %v2275 = vsel %vm2178, %v1762, -inf
        %2276 = vmax.xlane.f32.xlu0 %v2275
        %v2277 = vpop.xlane.xlu0 %2276
        %v2278 = vsel %vm2178, %v1898, -inf
        %2279 = vmax.xlane.f32.xlu0 %v2278
        %v2280 = vpop.xlane.xlu0 %2279
        %v2281 = vsel %vm2178, %v1763, -inf
        %2282 = vmax.xlane.f32.xlu0 %v2281
        %v2283 = vpop.xlane.xlu0 %2282
        %v2284 = vsel %vm2178, %v1899, -inf
        %2285 = vmax.xlane.f32.xlu0 %v2284
        %v2286 = vpop.xlane.xlu0 %2285
        %v2287 = vsel %vm2178, %v1764, -inf
        %2288 = vmax.xlane.f32.xlu0 %v2287
        %v2289 = vpop.xlane.xlu0 %2288
        %v2290 = vsel %vm2178, %v1900, -inf
        %2291 = vmax.xlane.f32.xlu0 %v2290
        %v2292 = vpop.xlane.xlu0 %2291
        %v2293 = vsel %vm2178, %v1765, -inf
        %2294 = vmax.xlane.f32.xlu0 %v2293
        %v2295 = vpop.xlane.xlu0 %2294
        %v2296 = vsel %vm2178, %v1901, -inf
        %2297 = vmax.xlane.f32.xlu0 %v2296
        %v2298 = vpop.xlane.xlu0 %2297
        %v2299 = vsel %vm2178, %v1766, -inf
        %2300 = vmax.xlane.f32.xlu0 %v2299
        %v2301 = vpop.xlane.xlu0 %2300
        %v2302 = vsel %vm2178, %v1902, -inf
        %2303 = vmax.xlane.f32.xlu0 %v2302
        %v2304 = vpop.xlane.xlu0 %2303
        %v2305 = vsel %vm2178, %v1767, -inf
        %2306 = vmax.xlane.f32.xlu0 %v2305
        %v2307 = vpop.xlane.xlu0 %2306
        %v2308 = vsel %vm2178, %v1903, -inf
        %2309 = vmax.xlane.f32.xlu0 %v2308
        %v2310 = vpop.xlane.xlu0 %2309
        %v2311 = vsel %vm2178, %v1768, -inf
        %2312 = vmax.xlane.f32.xlu0 %v2311
        %v2313 = vpop.xlane.xlu0 %2312
        %v2314 = vsel %vm2178, %v1904, -inf
        %2315 = vmax.xlane.f32.xlu0 %v2314
        %v2316 = vpop.xlane.xlu0 %2315
        %v2317 = vsel %vm2178, %v1769, -inf
        %2318 = vmax.xlane.f32.xlu0 %v2317
        %v2319 = vpop.xlane.xlu0 %2318
        %v2320 = vsel %vm2178, %v1905, -inf
        %2321 = vmax.xlane.f32.xlu0 %v2320
        %v2322 = vpop.xlane.xlu0 %2321
        %v2323 = vsel %vm2178, %v2034, -inf
        %2324 = vmax.xlane.f32.xlu0 %v2323
        %v2325 = vpop.xlane.xlu0 %2324
        %v2326 = vsel %vm2178, %v2170, -inf
        %2327 = vmax.xlane.f32.xlu0 %v2326
        %v2328 = vpop.xlane.xlu0 %2327
        %v2329 = vsel %vm2178, %v2035, -inf
        %2330 = vmax.xlane.f32.xlu0 %v2329
        %v2331 = vpop.xlane.xlu0 %2330
        %v2332 = vsel %vm2178, %v2171, -inf
        %2333 = vmax.xlane.f32.xlu0 %v2332
        %v2334 = vpop.xlane.xlu0 %2333
        %v2335 = vsel %vm2178, %v2036, -inf
        %2336 = vmax.xlane.f32.xlu0 %v2335
        %v2337 = vpop.xlane.xlu0 %2336
        %v2338 = vsel %vm2178, %v2172, -inf
        %2339 = vmax.xlane.f32.xlu0 %v2338
        %v2340 = vpop.xlane.xlu0 %2339
        %v2341 = vsel %vm2178, %v2037, -inf
        %2342 = vmax.xlane.f32.xlu0 %v2341
        %v2343 = vpop.xlane.xlu0 %2342
        %v2344 = vsel %vm2178, %v2173, -inf
        %2345 = vmax.xlane.f32.xlu0 %v2344
        %v2346 = vpop.xlane.xlu0 %2345
        %v2347 = vsel %vm2178, %v2038, -inf
        %2348 = vmax.xlane.f32.xlu0 %v2347
        %v2349 = vpop.xlane.xlu0 %2348
        %v2350 = vsel %vm2178, %v2174, -inf
        %2351 = vmax.xlane.f32.xlu0 %v2350
        %v2352 = vpop.xlane.xlu0 %2351
        %v2353 = vsel %vm2178, %v2039, -inf
        %2354 = vmax.xlane.f32.xlu0 %v2353
        %v2355 = vpop.xlane.xlu0 %2354
        %v2356 = vsel %vm2178, %v2175, -inf
        %2357 = vmax.xlane.f32.xlu0 %v2356
        %v2358 = vpop.xlane.xlu0 %2357
        %v2359 = vsel %vm2178, %v2040, -inf
        %2360 = vmax.xlane.f32.xlu0 %v2359
        %v2361 = vpop.xlane.xlu0 %2360
        %v2362 = vsel %vm2178, %v2176, -inf
        %2363 = vmax.xlane.f32.xlu0 %v2362
        %v2364 = vpop.xlane.xlu0 %2363
        %v2365 = vsel %vm2178, %v2041, -inf
        %2366 = vmax.xlane.f32.xlu0 %v2365
        %v2367 = vpop.xlane.xlu0 %2366
        %v2368 = vsel %vm2178, %v2177, -inf
        %2369 = vmax.xlane.f32.xlu0 %v2368
        %v2370 = vpop.xlane.xlu0 %2369
        %v2371 = vld [vmem:[%s7] sm:$0xff]
        %v2372 = vld [vmem:[%s7 + $0x8] sm:$0xff]
        %v2373 = vld [vmem:[%s7 + $0x10] sm:$0xff]
        %v2374 = vld [vmem:[%s7 + $0x18] sm:$0xff]
        %v2375 = vld [vmem:[%s7 + $0x20] sm:$0xff]
        %v2376 = vld [vmem:[%s7 + $0x28] sm:$0xff]
        %v2377 = vld [vmem:[%s7 + $0x30] sm:$0xff]
        %v2378 = vld [vmem:[%s7 + $0x38] sm:$0xff]
        %v2379 = vld [vmem:[%s8] sm:$0xff]
        %v2380 = vld [vmem:[%s8 + $0x8] sm:$0xff]
        %v2381 = vld [vmem:[%s8 + $0x10] sm:$0xff]
        %v2382 = vld [vmem:[%s8 + $0x18] sm:$0xff]
        %v2383 = vld [vmem:[%s8 + $0x20] sm:$0xff]
        %v2384 = vld [vmem:[%s8 + $0x28] sm:$0xff]
        %v2385 = vld [vmem:[%s8 + $0x30] sm:$0xff]
        %v2386 = vld [vmem:[%s8 + $0x38] sm:$0xff]
        %v2387 = vld [vmem:[%s9] sm:$0xff]
        %v2388 = vld [vmem:[%s9 + $0x8] sm:$0xff]
        %v2389 = vld [vmem:[%s9 + $0x10] sm:$0xff]
        %v2390 = vld [vmem:[%s9 + $0x18] sm:$0xff]
        %v2391 = vld [vmem:[%s9 + $0x20] sm:$0xff]
        %v2392 = vld [vmem:[%s9 + $0x28] sm:$0xff]
        %v2393 = vld [vmem:[%s9 + $0x30] sm:$0xff]
        %v2394 = vld [vmem:[%s9 + $0x38] sm:$0xff]
        %vm2395 = vcmask 523264
        %v2397 = vsel %vm2395, %v2379, 0
        %v2400 = vsel %vm2395, %v2380, 0
        %v2403 = vsel %vm2395, %v2381, 0
        %v2406 = vsel %vm2395, %v2382, 0
        %v2409 = vsel %vm2395, %v2383, 0
        %v2412 = vsel %vm2395, %v2384, 0
        %v2415 = vsel %vm2395, %v2385, 0
        %v2418 = vsel %vm2395, %v2386, 0
        %2420 = vmatprep.subr.mxu0 0.0
        %2421 = vmatpush1.msra.mxu0 %v891
        %2422 = vmatprep.subr.mxu0 0.0
        %2423 = vmatpush1.msra.mxu0 %v893
        %2424 = vmatprep.subr.mxu0 0.0
        %2425 = vmatpush1.msra.mxu0 %v895
        %2426 = vmatprep.subr.mxu0 0.0
        %2427 = vmatpush1.msra.mxu0 %v897
        %2428 = vmatprep.subr.mxu0 0.0
        %2429 = vmatpush1.msra.mxu0 %v899
        %2430 = vmatprep.subr.mxu0 0.0
        %2431 = vmatpush1.msra.mxu0 %v901
        %2432 = vmatprep.subr.mxu0 0.0
        %2433 = vmatpush1.msra.mxu0 %v903
        %2434 = vmatprep.subr.mxu0 0.0
        %2435 = vmatpush1.msra.mxu0 %v905
        %2436 = vmatprep.subr.mxu0 0.0
        %2437 = vmatpush1.msra.mxu0 0.0
        %2438 = vmatprep.subr.mxu0 0.0
        %2439 = vmatpush1.msra.mxu0 0.0
        %2440 = vmatprep.subr.mxu0 0.0
        %2441 = vmatpush1.msra.mxu0 0.0
        %2442 = vmatprep.subr.mxu0 0.0
        %2443 = vmatpush1.msra.mxu0 0.0
        %2444 = vmatprep.subr.mxu0 0.0
        %2445 = vmatpush1.msra.mxu0 0.0
        %2446 = vmatprep.subr.mxu0 0.0
        %2447 = vmatpush1.msra.mxu0 0.0
        %2448 = vmatprep.subr.mxu0 0.0
        %2449 = vmatpush1.msra.mxu0 0.0
        %2450 = vmatprep.subr.mxu0 0.0
        %2451 = vmatpush1.msra.mxu0 0.0
        %2452 = vmatprep.subr.mxu0 0.0
        %2453 = vmatpush1.msra.mxu0 0.0
        %2454 = vmatprep.subr.mxu0 0.0
        %2455 = vmatpush1.msra.mxu0 0.0
        %2456 = vmatprep.subr.mxu0 0.0
        %2457 = vmatpush1.msra.mxu0 0.0
        %2458 = vmatprep.subr.mxu0 0.0
        %2459 = vmatpush1.msra.mxu0 0.0
        %2460 = vmatprep.subr.mxu0 0.0
        %2461 = vmatpush1.msra.mxu0 0.0
        %2462 = vmatprep.subr.mxu0 0.0
        %2463 = vmatpush1.msra.mxu0 0.0
        %2464 = vmatprep.subr.mxu0 0.0
        %2465 = vmatpush1.msra.mxu0 0.0
        %2466 = vmatprep.subr.mxu0 0.0
        %2467 = vmatpush1.msra.mxu0 0.0
        %2468 = vmatprep.subr.mxu0 0.0
        %2469 = vmatpush1.msra.mxu0 0.0
        %2470 = vmatprep.subr.mxu0 0.0
        %2471 = vmatpush1.msra.mxu0 0.0
        %2472 = vmatprep.subr.mxu0 0.0
        %2473 = vmatpush1.msra.mxu0 0.0
        %2474 = vmatprep.subr.mxu0 0.0
        %2475 = vmatpush1.msra.mxu0 0.0
        %2476 = vmatprep.subr.mxu0 0.0
        %2477 = vmatpush1.msra.mxu0 0.0
        %2478 = vmatprep.subr.mxu0 0.0
        %2479 = vmatpush1.msra.mxu0 0.0
        %2480 = vmatprep.subr.mxu0 0.0
        %2481 = vmatpush1.msra.mxu0 0.0
        %2482 = vmatprep.subr.mxu0 0.0
        %2483 = vmatpush1.msra.mxu0 0.0
        %2484 = vmatprep.mubr.f32.mxu0 0.0
        %2485 = vmatmul.mubr.f32.gmra.mrb[0].mxu0 %v2397
        %v2486 = vpop.f32.mrb[0].mxu0
        %v2487 = vadd.f32 %v2387, %v2486
        %v2488 = vpop.f32.mrb[0].mxu0
        %2489 = vmatprep.mubr.f32.mxu0 0.0
        %2490 = vmatmul.mubr.f32.gmra.mrb[0].mxu0 %v2400
        %v2491 = vpop.f32.mrb[0].mxu0
        %v2492 = vadd.f32 %v2388, %v2491
        %v2493 = vpop.f32.mrb[0].mxu0
        %2494 = vmatprep.mubr.f32.mxu0 0.0
        %2495 = vmatmul.mubr.f32.gmra.mrb[0].mxu0 %v2403
        %v2496 = vpop.f32.mrb[0].mxu0
        %v2497 = vadd.f32 %v2389, %v2496
        %v2498 = vpop.f32.mrb[0].mxu0
        %2499 = vmatprep.mubr.f32.mxu0 0.0
        %2500 = vmatmul.mubr.f32.gmra.mrb[0].mxu0 %v2406
        %v2501 = vpop.f32.mrb[0].mxu0
        %v2502 = vadd.f32 %v2390, %v2501
        %v2503 = vpop.f32.mrb[0].mxu0
        %2504 = vmatprep.mubr.f32.mxu0 0.0
        %2505 = vmatmul.mubr.f32.gmra.mrb[0].mxu0 %v2409
        %v2506 = vpop.f32.mrb[0].mxu0
        %v2507 = vadd.f32 %v2391, %v2506
        %v2508 = vpop.f32.mrb[0].mxu0
        %2509 = vmatprep.mubr.f32.mxu0 0.0
        %2510 = vmatmul.mubr.f32.gmra.mrb[0].mxu0 %v2412
        %v2511 = vpop.f32.mrb[0].mxu0
        %v2512 = vadd.f32 %v2392, %v2511
        %v2513 = vpop.f32.mrb[0].mxu0
        %2514 = vmatprep.mubr.f32.mxu0 0.0
        %2515 = vmatmul.mubr.f32.gmra.mrb[0].mxu0 %v2415
        %v2516 = vpop.f32.mrb[0].mxu0
        %v2517 = vadd.f32 %v2393, %v2516
        %v2518 = vpop.f32.mrb[0].mxu0
        %2519 = vmatprep.mubr.f32.mxu0 0.0
        %2520 = vmatmul.mubr.f32.gmra.mrb[0].mxu0 %v2418
        %v2521 = vpop.f32.mrb[0].mxu0
        %v2522 = vadd.f32 %v2394, %v2521
        %v2523 = vpop.f32.mrb[0].mxu0
        %2524 = vdwg.mxu0
        %2526 = vset.pattern.permute.xlu0 0
        %2527 = vperm.xlu0 %2526, %v2487
        %v2528 = vpop.permute.xlu0 %2527
        %2531 = vset.pattern.permute.xlu0 0
        %2532 = vperm.xlu0 %2531, %v2492
        %v2533 = vpop.permute.xlu0 %2532
        %2536 = vset.pattern.permute.xlu0 0
        %2537 = vperm.xlu0 %2536, %v2497
        %v2538 = vpop.permute.xlu0 %2537
        %2541 = vset.pattern.permute.xlu0 0
        %2542 = vperm.xlu0 %2541, %v2502
        %v2543 = vpop.permute.xlu0 %2542
        %2546 = vset.pattern.permute.xlu0 0
        %2547 = vperm.xlu0 %2546, %v2507
        %v2548 = vpop.permute.xlu0 %2547
        %2551 = vset.pattern.permute.xlu0 0
        %2552 = vperm.xlu0 %2551, %v2512
        %v2553 = vpop.permute.xlu0 %2552
        %2556 = vset.pattern.permute.xlu0 0
        %2557 = vperm.xlu0 %2556, %v2517
        %v2558 = vpop.permute.xlu0 %2557
        %2561 = vset.pattern.permute.xlu0 0
        %2562 = vperm.xlu0 %2561, %v2522
        %v2563 = vpop.permute.xlu0 %2562
        %v2629 = vlaneseq
        %v2630 = vand.u32 %v2629, 127
        %v2631 = vlaneseq
        %v2632 = vshrl.u32 %v2631, 7
        %v2633 = vsub.s32 %v2630, %v2632
        %v2634 = vrot.slane %v2181, %v2633
        %v2635 = vadd.s32 %v2630, 4294967288
        %v2636 = vlaneseq
        %v2637 = vshrl.u32 %v2636, 7
        %v2638 = vsub.s32 %v2635, %v2637
        %v2639 = vrot.slane %v2184, %v2638
        %vm2640 = vcmask 130112
        %v2641 = vsel %vm2640, %v2639, %v2634
        %v2642 = vlaneseq
        %v2643 = vshrl.u32 %v2642, 7
        %v2644 = vsub.s32 %v2630, %v2643
        %v2645 = vrot.slane %v2187, %v2644
        %v2646 = vlaneseq
        %v2647 = vshrl.u32 %v2646, 7
        %v2648 = vsub.s32 %v2635, %v2647
        %v2649 = vrot.slane %v2190, %v2648
        %v2650 = vsel %vm2640, %v2649, %v2645
        %v2651 = vlaneseq
        %v2652 = vshrl.u32 %v2651, 7
        %v2653 = vsub.s32 %v2630, %v2652
        %v2654 = vrot.slane %v2193, %v2653
        %v2655 = vlaneseq
        %v2656 = vshrl.u32 %v2655, 7
        %v2657 = vsub.s32 %v2635, %v2656
        %v2658 = vrot.slane %v2196, %v2657
        %v2659 = vsel %vm2640, %v2658, %v2654
        %v2660 = vlaneseq
        %v2661 = vshrl.u32 %v2660, 7
        %v2662 = vsub.s32 %v2630, %v2661
        %v2663 = vrot.slane %v2199, %v2662
        %v2664 = vlaneseq
        %v2665 = vshrl.u32 %v2664, 7
        %v2666 = vsub.s32 %v2635, %v2665
        %v2667 = vrot.slane %v2202, %v2666
        %v2668 = vsel %vm2640, %v2667, %v2663
        %v2669 = vlaneseq
        %v2670 = vshrl.u32 %v2669, 7
        %v2671 = vsub.s32 %v2630, %v2670
        %v2672 = vrot.slane %v2205, %v2671
        %v2673 = vlaneseq
        %v2674 = vshrl.u32 %v2673, 7
        %v2675 = vsub.s32 %v2635, %v2674
        %v2676 = vrot.slane %v2208, %v2675
        %v2677 = vsel %vm2640, %v2676, %v2672
        %v2678 = vlaneseq
        %v2679 = vshrl.u32 %v2678, 7
        %v2680 = vsub.s32 %v2630, %v2679
        %v2681 = vrot.slane %v2211, %v2680
        %v2682 = vlaneseq
        %v2683 = vshrl.u32 %v2682, 7
        %v2684 = vsub.s32 %v2635, %v2683
        %v2685 = vrot.slane %v2214, %v2684
        %v2686 = vsel %vm2640, %v2685, %v2681
        %v2687 = vlaneseq
        %v2688 = vshrl.u32 %v2687, 7
        %v2689 = vsub.s32 %v2630, %v2688
        %v2690 = vrot.slane %v2217, %v2689
        %v2691 = vlaneseq
        %v2692 = vshrl.u32 %v2691, 7
        %v2693 = vsub.s32 %v2635, %v2692
        %v2694 = vrot.slane %v2220, %v2693
        %v2695 = vsel %vm2640, %v2694, %v2690
        %v2696 = vlaneseq
        %v2697 = vshrl.u32 %v2696, 7
        %v2698 = vsub.s32 %v2630, %v2697
        %v2699 = vrot.slane %v2223, %v2698
        %v2700 = vlaneseq
        %v2701 = vshrl.u32 %v2700, 7
        %v2702 = vsub.s32 %v2635, %v2701
        %v2703 = vrot.slane %v2226, %v2702
        %v2704 = vsel %vm2640, %v2703, %v2699
        %v2705 = vlaneseq
        %v2706 = vshrl.u32 %v2705, 7
        %v2707 = vsub.s32 %v2630, %v2706
        %v2708 = vrot.slane %v2229, %v2707
        %v2709 = vlaneseq
        %v2710 = vshrl.u32 %v2709, 7
        %v2711 = vsub.s32 %v2635, %v2710
        %v2712 = vrot.slane %v2232, %v2711
        %v2713 = vsel %vm2640, %v2712, %v2708
        %v2714 = vlaneseq
        %v2715 = vshrl.u32 %v2714, 7
        %v2716 = vsub.s32 %v2630, %v2715
        %v2717 = vrot.slane %v2235, %v2716
        %v2718 = vlaneseq
        %v2719 = vshrl.u32 %v2718, 7
        %v2720 = vsub.s32 %v2635, %v2719
        %v2721 = vrot.slane %v2238, %v2720
        %v2722 = vsel %vm2640, %v2721, %v2717
        %v2723 = vlaneseq
        %v2724 = vshrl.u32 %v2723, 7
        %v2725 = vsub.s32 %v2630, %v2724
        %v2726 = vrot.slane %v2241, %v2725
        %v2727 = vlaneseq
        %v2728 = vshrl.u32 %v2727, 7
        %v2729 = vsub.s32 %v2635, %v2728
        %v2730 = vrot.slane %v2244, %v2729
        %v2731 = vsel %vm2640, %v2730, %v2726
        %v2732 = vlaneseq
        %v2733 = vshrl.u32 %v2732, 7
        %v2734 = vsub.s32 %v2630, %v2733
        %v2735 = vrot.slane %v2247, %v2734
        %v2736 = vlaneseq
        %v2737 = vshrl.u32 %v2736, 7
        %v2738 = vsub.s32 %v2635, %v2737
        %v2739 = vrot.slane %v2250, %v2738
        %v2740 = vsel %vm2640, %v2739, %v2735
        %v2741 = vlaneseq
        %v2742 = vshrl.u32 %v2741, 7
        %v2743 = vsub.s32 %v2630, %v2742
        %v2744 = vrot.slane %v2253, %v2743
        %v2745 = vlaneseq
        %v2746 = vshrl.u32 %v2745, 7
        %v2747 = vsub.s32 %v2635, %v2746
        %v2748 = vrot.slane %v2256, %v2747
        %v2749 = vsel %vm2640, %v2748, %v2744
        %v2750 = vlaneseq
        %v2751 = vshrl.u32 %v2750, 7
        %v2752 = vsub.s32 %v2630, %v2751
        %v2753 = vrot.slane %v2259, %v2752
        %v2754 = vlaneseq
        %v2755 = vshrl.u32 %v2754, 7
        %v2756 = vsub.s32 %v2635, %v2755
        %v2757 = vrot.slane %v2262, %v2756
        %v2758 = vsel %vm2640, %v2757, %v2753
        %v2759 = vlaneseq
        %v2760 = vshrl.u32 %v2759, 7
        %v2761 = vsub.s32 %v2630, %v2760
        %v2762 = vrot.slane %v2265, %v2761
        %v2763 = vlaneseq
        %v2764 = vshrl.u32 %v2763, 7
        %v2765 = vsub.s32 %v2635, %v2764
        %v2766 = vrot.slane %v2268, %v2765
        %v2767 = vsel %vm2640, %v2766, %v2762
        %v2768 = vlaneseq
        %v2769 = vshrl.u32 %v2768, 7
        %v2770 = vsub.s32 %v2630, %v2769
        %v2771 = vrot.slane %v2271, %v2770
        %v2772 = vlaneseq
        %v2773 = vshrl.u32 %v2772, 7
        %v2774 = vsub.s32 %v2635, %v2773
        %v2775 = vrot.slane %v2274, %v2774
        %v2776 = vsel %vm2640, %v2775, %v2771
        %v2777 = vlaneseq
        %v2778 = vshrl.u32 %v2777, 7
        %v2779 = vsub.s32 %v2630, %v2778
        %v2780 = vrot.slane %v2277, %v2779
        %v2781 = vlaneseq
        %v2782 = vshrl.u32 %v2781, 7
        %v2783 = vsub.s32 %v2635, %v2782
        %v2784 = vrot.slane %v2280, %v2783
        %v2785 = vsel %vm2640, %v2784, %v2780
        %v2786 = vlaneseq
        %v2787 = vshrl.u32 %v2786, 7
        %v2788 = vsub.s32 %v2630, %v2787
        %v2789 = vrot.slane %v2283, %v2788
        %v2790 = vlaneseq
        %v2791 = vshrl.u32 %v2790, 7
        %v2792 = vsub.s32 %v2635, %v2791
        %v2793 = vrot.slane %v2286, %v2792
        %v2794 = vsel %vm2640, %v2793, %v2789
        %v2795 = vlaneseq
        %v2796 = vshrl.u32 %v2795, 7
        %v2797 = vsub.s32 %v2630, %v2796
        %v2798 = vrot.slane %v2289, %v2797
        %v2799 = vlaneseq
        %v2800 = vshrl.u32 %v2799, 7
        %v2801 = vsub.s32 %v2635, %v2800
        %v2802 = vrot.slane %v2292, %v2801
        %v2803 = vsel %vm2640, %v2802, %v2798
        %v2804 = vlaneseq
        %v2805 = vshrl.u32 %v2804, 7
        %v2806 = vsub.s32 %v2630, %v2805
        %v2807 = vrot.slane %v2295, %v2806
        %v2808 = vlaneseq
        %v2809 = vshrl.u32 %v2808, 7
        %v2810 = vsub.s32 %v2635, %v2809
        %v2811 = vrot.slane %v2298, %v2810
        %v2812 = vsel %vm2640, %v2811, %v2807
        %v2813 = vlaneseq
        %v2814 = vshrl.u32 %v2813, 7
        %v2815 = vsub.s32 %v2630, %v2814
        %v2816 = vrot.slane %v2301, %v2815
        %v2817 = vlaneseq
        %v2818 = vshrl.u32 %v2817, 7
        %v2819 = vsub.s32 %v2635, %v2818
        %v2820 = vrot.slane %v2304, %v2819
        %v2821 = vsel %vm2640, %v2820, %v2816
        %v2822 = vlaneseq
        %v2823 = vshrl.u32 %v2822, 7
        %v2824 = vsub.s32 %v2630, %v2823
        %v2825 = vrot.slane %v2307, %v2824
        %v2826 = vlaneseq
        %v2827 = vshrl.u32 %v2826, 7
        %v2828 = vsub.s32 %v2635, %v2827
        %v2829 = vrot.slane %v2310, %v2828
        %v2830 = vsel %vm2640, %v2829, %v2825
        %v2831 = vlaneseq
        %v2832 = vshrl.u32 %v2831, 7
        %v2833 = vsub.s32 %v2630, %v2832
        %v2834 = vrot.slane %v2313, %v2833
        %v2835 = vlaneseq
        %v2836 = vshrl.u32 %v2835, 7
        %v2837 = vsub.s32 %v2635, %v2836
        %v2838 = vrot.slane %v2316, %v2837
        %v2839 = vsel %vm2640, %v2838, %v2834
        %v2840 = vlaneseq
        %v2841 = vshrl.u32 %v2840, 7
        %v2842 = vsub.s32 %v2630, %v2841
        %v2843 = vrot.slane %v2319, %v2842
        %v2844 = vlaneseq
        %v2845 = vshrl.u32 %v2844, 7
        %v2846 = vsub.s32 %v2635, %v2845
        %v2847 = vrot.slane %v2322, %v2846
        %v2848 = vsel %vm2640, %v2847, %v2843
        %v2849 = vlaneseq
        %v2850 = vshrl.u32 %v2849, 7
        %v2851 = vsub.s32 %v2630, %v2850
        %v2852 = vrot.slane %v2325, %v2851
        %v2853 = vlaneseq
        %v2854 = vshrl.u32 %v2853, 7
        %v2855 = vsub.s32 %v2635, %v2854
        %v2856 = vrot.slane %v2328, %v2855
        %v2857 = vsel %vm2640, %v2856, %v2852
        %v2858 = vlaneseq
        %v2859 = vshrl.u32 %v2858, 7
        %v2860 = vsub.s32 %v2630, %v2859
        %v2861 = vrot.slane %v2331, %v2860
        %v2862 = vlaneseq
        %v2863 = vshrl.u32 %v2862, 7
        %v2864 = vsub.s32 %v2635, %v2863
        %v2865 = vrot.slane %v2334, %v2864
        %v2866 = vsel %vm2640, %v2865, %v2861
        %v2867 = vlaneseq
        %v2868 = vshrl.u32 %v2867, 7
        %v2869 = vsub.s32 %v2630, %v2868
        %v2870 = vrot.slane %v2337, %v2869
        %v2871 = vlaneseq
        %v2872 = vshrl.u32 %v2871, 7
        %v2873 = vsub.s32 %v2635, %v2872
        %v2874 = vrot.slane %v2340, %v2873
        %v2875 = vsel %vm2640, %v2874, %v2870
        %v2876 = vlaneseq
        %v2877 = vshrl.u32 %v2876, 7
        %v2878 = vsub.s32 %v2630, %v2877
        %v2879 = vrot.slane %v2343, %v2878
        %v2880 = vlaneseq
        %v2881 = vshrl.u32 %v2880, 7
        %v2882 = vsub.s32 %v2635, %v2881
        %v2883 = vrot.slane %v2346, %v2882
        %v2884 = vsel %vm2640, %v2883, %v2879
        %v2885 = vlaneseq
        %v2886 = vshrl.u32 %v2885, 7
        %v2887 = vsub.s32 %v2630, %v2886
        %v2888 = vrot.slane %v2349, %v2887
        %v2889 = vlaneseq
        %v2890 = vshrl.u32 %v2889, 7
        %v2891 = vsub.s32 %v2635, %v2890
        %v2892 = vrot.slane %v2352, %v2891
        %v2893 = vsel %vm2640, %v2892, %v2888
        %v2894 = vlaneseq
        %v2895 = vshrl.u32 %v2894, 7
        %v2896 = vsub.s32 %v2630, %v2895
        %v2897 = vrot.slane %v2355, %v2896
        %v2898 = vlaneseq
        %v2899 = vshrl.u32 %v2898, 7
        %v2900 = vsub.s32 %v2635, %v2899
        %v2901 = vrot.slane %v2358, %v2900
        %v2902 = vsel %vm2640, %v2901, %v2897
        %v2903 = vlaneseq
        %v2904 = vshrl.u32 %v2903, 7
        %v2905 = vsub.s32 %v2630, %v2904
        %v2906 = vrot.slane %v2361, %v2905
        %v2907 = vlaneseq
        %v2908 = vshrl.u32 %v2907, 7
        %v2909 = vsub.s32 %v2635, %v2908
        %v2910 = vrot.slane %v2364, %v2909
        %v2911 = vsel %vm2640, %v2910, %v2906
        %v2912 = vlaneseq
        %v2913 = vshrl.u32 %v2912, 7
        %v2914 = vsub.s32 %v2630, %v2913
        %v2915 = vrot.slane %v2367, %v2914
        %v2916 = vlaneseq
        %v2917 = vshrl.u32 %v2916, 7
        %v2918 = vsub.s32 %v2635, %v2917
        %v2919 = vrot.slane %v2370, %v2918
        %v2920 = vsel %vm2640, %v2919, %v2915
        %vm2921 = vcmask 1041409
        %v2922 = vsel %vm2921, %v2650, %v2641
        %vm2923 = vcmask 1042434
        %v2924 = vsel %vm2923, %v2659, %v2922
        %vm2925 = vcmask 1043459
        %v2926 = vsel %vm2925, %v2668, %v2924
        %vm2927 = vcmask 1044484
        %v2928 = vsel %vm2927, %v2677, %v2926
        %vm2929 = vcmask 1045509
        %v2930 = vsel %vm2929, %v2686, %v2928
        %vm2931 = vcmask 1046534
        %v2932 = vsel %vm2931, %v2695, %v2930
        %vm2933 = vcmask 1047559
        %v2934 = vsel %vm2933, %v2704, %v2932
        %v2935 = vsel %vm2921, %v2722, %v2713
        %v2936 = vsel %vm2923, %v2731, %v2935
        %v2937 = vsel %vm2925, %v2740, %v2936
        %v2938 = vsel %vm2927, %v2749, %v2937
        %v2939 = vsel %vm2929, %v2758, %v2938
        %v2940 = vsel %vm2931, %v2767, %v2939
        %v2941 = vsel %vm2933, %v2776, %v2940
        %v2942 = vsel %vm2921, %v2794, %v2785
        %v2943 = vsel %vm2923, %v2803, %v2942
        %v2944 = vsel %vm2925, %v2812, %v2943
        %v2945 = vsel %vm2927, %v2821, %v2944
        %v2946 = vsel %vm2929, %v2830, %v2945
        %v2947 = vsel %vm2931, %v2839, %v2946
        %v2948 = vsel %vm2933, %v2848, %v2947
        %v2949 = vsel %vm2921, %v2866, %v2857
        %v2950 = vsel %vm2923, %v2875, %v2949
        %v2951 = vsel %vm2925, %v2884, %v2950
        %v2952 = vsel %vm2927, %v2893, %v2951
        %v2953 = vsel %vm2929, %v2902, %v2952
        %v2954 = vsel %vm2931, %v2911, %v2953
        %v2955 = vsel %vm2933, %v2920, %v2954
        %v2961 = vsel %vm752, %v2371, 0
        %v2964 = vsel %vm752, %v2372, 0
        %v2967 = vsel %vm752, %v2373, 0
        %v2970 = vsel %vm752, %v2374, 0
        %v2973 = vsel %vm752, %v2375, 0
        %v2976 = vsel %vm752, %v2376, 0
        %v2979 = vsel %vm752, %v2377, 0
        %v2982 = vsel %vm752, %v2378, 0
        %2984 = vmatprep.subr.mxu0 0.0
        %2985 = vmatpush1.msra.mxu0 %v2934
        %2986 = vmatprep.subr.mxu0 0.0
        %2987 = vmatpush1.msra.mxu0 %v2941
        %2988 = vmatprep.subr.mxu0 0.0
        %2989 = vmatpush1.msra.mxu0 %v2948
        %2990 = vmatprep.subr.mxu0 0.0
        %2991 = vmatpush1.msra.mxu0 %v2955
        %2992 = vmatprep.subr.mxu0 0.0
        %2993 = vmatpush1.msra.mxu0 0.0
        %2994 = vmatprep.subr.mxu0 0.0
        %2995 = vmatpush1.msra.mxu0 0.0
        %2996 = vmatprep.subr.mxu0 0.0
        %2997 = vmatpush1.msra.mxu0 0.0
        %2998 = vmatprep.subr.mxu0 0.0
        %2999 = vmatpush1.msra.mxu0 0.0
        %3000 = vmatprep.subr.mxu0 0.0
        %3001 = vmatpush1.msra.mxu0 0.0
        %3002 = vmatprep.subr.mxu0 0.0
        %3003 = vmatpush1.msra.mxu0 0.0
        %3004 = vmatprep.subr.mxu0 0.0
        %3005 = vmatpush1.msra.mxu0 0.0
        %3006 = vmatprep.subr.mxu0 0.0
        %3007 = vmatpush1.msra.mxu0 0.0
        %3008 = vmatprep.subr.mxu0 0.0
        %3009 = vmatpush1.msra.mxu0 0.0
        %3010 = vmatprep.subr.mxu0 0.0
        %3011 = vmatpush1.msra.mxu0 0.0
        %3012 = vmatprep.subr.mxu0 0.0
        %3013 = vmatpush1.msra.mxu0 0.0
        %3014 = vmatprep.subr.mxu0 0.0
        %3015 = vmatpush1.msra.mxu0 0.0
        %3016 = vmatprep.subr.mxu0 0.0
        %3017 = vmatpush1.msra.mxu0 0.0
        %3018 = vmatprep.subr.mxu0 0.0
        %3019 = vmatpush1.msra.mxu0 0.0
        %3020 = vmatprep.subr.mxu0 0.0
        %3021 = vmatpush1.msra.mxu0 0.0
        %3022 = vmatprep.subr.mxu0 0.0
        %3023 = vmatpush1.msra.mxu0 0.0
        %3024 = vmatprep.subr.mxu0 0.0
        %3025 = vmatpush1.msra.mxu0 0.0
        %3026 = vmatprep.subr.mxu0 0.0
        %3027 = vmatpush1.msra.mxu0 0.0
        %3028 = vmatprep.subr.mxu0 0.0
        %3029 = vmatpush1.msra.mxu0 0.0
        %3030 = vmatprep.subr.mxu0 0.0
        %3031 = vmatpush1.msra.mxu0 0.0
        %3032 = vmatprep.subr.mxu0 0.0
        %3033 = vmatpush1.msra.mxu0 0.0
        %3034 = vmatprep.subr.mxu0 0.0
        %3035 = vmatpush1.msra.mxu0 0.0
        %3036 = vmatprep.subr.mxu0 0.0
        %3037 = vmatpush1.msra.mxu0 0.0
        %3038 = vmatprep.subr.mxu0 0.0
        %3039 = vmatpush1.msra.mxu0 0.0
        %3040 = vmatprep.subr.mxu0 0.0
        %3041 = vmatpush1.msra.mxu0 0.0
        %3042 = vmatprep.subr.mxu0 0.0
        %3043 = vmatpush1.msra.mxu0 0.0
        %3044 = vmatprep.subr.mxu0 0.0
        %3045 = vmatpush1.msra.mxu0 0.0
        %3046 = vmatprep.subr.mxu0 0.0
        %3047 = vmatpush1.msra.mxu0 0.0
        %3048 = vmatprep.mubr.f32.mxu0 0.0
        %3049 = vmatmul.mubr.f32.gmra.mrb[0].mxu0 %v2961
        %v3050 = vpop.f32.mrb[0].mxu0
        %v3051 = vadd.f32 %v2528, %v3050
        %v3052 = vpop.f32.mrb[0].mxu0
        %3053 = vmatprep.mubr.f32.mxu0 0.0
        %3054 = vmatmul.mubr.f32.gmra.mrb[0].mxu0 %v2964
        %v3055 = vpop.f32.mrb[0].mxu0
        %v3056 = vadd.f32 %v2533, %v3055
        %v3057 = vpop.f32.mrb[0].mxu0
        %3058 = vmatprep.mubr.f32.mxu0 0.0
        %3059 = vmatmul.mubr.f32.gmra.mrb[0].mxu0 %v2967
        %v3060 = vpop.f32.mrb[0].mxu0
        %v3061 = vadd.f32 %v2538, %v3060
        %v3062 = vpop.f32.mrb[0].mxu0
        %3063 = vmatprep.mubr.f32.mxu0 0.0
        %3064 = vmatmul.mubr.f32.gmra.mrb[0].mxu0 %v2970
        %v3065 = vpop.f32.mrb[0].mxu0
        %v3066 = vadd.f32 %v2543, %v3065
        %v3067 = vpop.f32.mrb[0].mxu0
        %3068 = vmatprep.mubr.f32.mxu0 0.0
        %3069 = vmatmul.mubr.f32.gmra.mrb[0].mxu0 %v2973
        %v3070 = vpop.f32.mrb[0].mxu0
        %v3071 = vadd.f32 %v2548, %v3070
        %v3072 = vpop.f32.mrb[0].mxu0
        %3073 = vmatprep.mubr.f32.mxu0 0.0
        %3074 = vmatmul.mubr.f32.gmra.mrb[0].mxu0 %v2976
        %v3075 = vpop.f32.mrb[0].mxu0
        %v3076 = vadd.f32 %v2553, %v3075
        %v3077 = vpop.f32.mrb[0].mxu0
        %3078 = vmatprep.mubr.f32.mxu0 0.0
        %3079 = vmatmul.mubr.f32.gmra.mrb[0].mxu0 %v2979
        %v3080 = vpop.f32.mrb[0].mxu0
        %v3081 = vadd.f32 %v2558, %v3080
        %v3082 = vpop.f32.mrb[0].mxu0
        %3083 = vmatprep.mubr.f32.mxu0 0.0
        %3084 = vmatmul.mubr.f32.gmra.mrb[0].mxu0 %v2982
        %v3085 = vpop.f32.mrb[0].mxu0
        %v3086 = vadd.f32 %v2563, %v3085
        %v3087 = vpop.f32.mrb[0].mxu0
        %3088 = vdwg.mxu0
        %v3089 = vmax.f32 %v3051, 0.0
        %v3090 = vmax.f32 %v3056, 0.0
        %v3091 = vmax.f32 %v3061, 0.0
        %v3092 = vmax.f32 %v3066, 0.0
        %v3093 = vmax.f32 %v3071, 0.0
        %v3094 = vmax.f32 %v3076, 0.0
        %v3095 = vmax.f32 %v3081, 0.0
        %v3096 = vmax.f32 %v3086, 0.0
        %v3097 = vld [vmem:[%s10] sm:$0xff]
        %v3098 = vld [vmem:[%s10 + $0x8] sm:$0xff]
        %v3099 = vld [vmem:[%s10 + $0x10] sm:$0xff]
        %v3100 = vld [vmem:[%s10 + $0x18] sm:$0xff]
        %v3101 = vld [vmem:[%s11] sm:$0xff]
        %v3102 = vld [vmem:[%s11 + $0x8] sm:$0xff]
        %v3103 = vld [vmem:[%s11 + $0x10] sm:$0xff]
        %v3104 = vld [vmem:[%s11 + $0x18] sm:$0xff]
        %3106 = vset.pattern.permute.xlu0 0
        %3107 = vperm.xlu0 %3106, %v3101
        %v3108 = vpop.permute.xlu0 %3107
        %3111 = vset.pattern.permute.xlu0 0
        %3112 = vperm.xlu0 %3111, %v3102
        %v3113 = vpop.permute.xlu0 %3112
        %3116 = vset.pattern.permute.xlu0 0
        %3117 = vperm.xlu0 %3116, %v3103
        %v3118 = vpop.permute.xlu0 %3117
        %3121 = vset.pattern.permute.xlu0 0
        %3122 = vperm.xlu0 %3121, %v3104
        %v3123 = vpop.permute.xlu0 %3122
        %v3126 = vsel %vm2395, %v3097, 0
        %v3129 = vsel %vm2395, %v3098, 0
        %v3132 = vsel %vm2395, %v3099, 0
        %v3135 = vsel %vm2395, %v3100, 0
        %3137 = vmatprep.subr.mxu0 0.0
        %3138 = vmatpush1.msra.mxu0 %v3089
        %3139 = vmatprep.subr.mxu0 0.0
        %3140 = vmatpush1.msra.mxu0 %v3090
        %3141 = vmatprep.subr.mxu0 0.0
        %3142 = vmatpush1.msra.mxu0 %v3091
        %3143 = vmatprep.subr.mxu0 0.0
        %3144 = vmatpush1.msra.mxu0 %v3092
        %3145 = vmatprep.subr.mxu0 0.0
        %3146 = vmatpush1.msra.mxu0 %v3093
        %3147 = vmatprep.subr.mxu0 0.0
        %3148 = vmatpush1.msra.mxu0 %v3094
        %3149 = vmatprep.subr.mxu0 0.0
        %3150 = vmatpush1.msra.mxu0 %v3095
        %3151 = vmatprep.subr.mxu0 0.0
        %3152 = vmatpush1.msra.mxu0 %v3096
        %3153 = vmatprep.subr.mxu0 0.0
        %3154 = vmatpush1.msra.mxu0 0.0
        %3155 = vmatprep.subr.mxu0 0.0
        %3156 = vmatpush1.msra.mxu0 0.0
        %3157 = vmatprep.subr.mxu0 0.0
        %3158 = vmatpush1.msra.mxu0 0.0
        %3159 = vmatprep.subr.mxu0 0.0
        %3160 = vmatpush1.msra.mxu0 0.0
        %3161 = vmatprep.subr.mxu0 0.0
        %3162 = vmatpush1.msra.mxu0 0.0
        %3163 = vmatprep.subr.mxu0 0.0
        %3164 = vmatpush1.msra.mxu0 0.0
        %3165 = vmatprep.subr.mxu0 0.0
        %3166 = vmatpush1.msra.mxu0 0.0
        %3167 = vmatprep.subr.mxu0 0.0
        %3168 = vmatpush1.msra.mxu0 0.0
        %3169 = vmatprep.subr.mxu0 0.0
        %3170 = vmatpush1.msra.mxu0 0.0
        %3171 = vmatprep.subr.mxu0 0.0
        %3172 = vmatpush1.msra.mxu0 0.0
        %3173 = vmatprep.subr.mxu0 0.0
        %3174 = vmatpush1.msra.mxu0 0.0
        %3175 = vmatprep.subr.mxu0 0.0
        %3176 = vmatpush1.msra.mxu0 0.0
        %3177 = vmatprep.subr.mxu0 0.0
        %3178 = vmatpush1.msra.mxu0 0.0
        %3179 = vmatprep.subr.mxu0 0.0
        %3180 = vmatpush1.msra.mxu0 0.0
        %3181 = vmatprep.subr.mxu0 0.0
        %3182 = vmatpush1.msra.mxu0 0.0
        %3183 = vmatprep.subr.mxu0 0.0
        %3184 = vmatpush1.msra.mxu0 0.0
        %3185 = vmatprep.subr.mxu0 0.0
        %3186 = vmatpush1.msra.mxu0 0.0
        %3187 = vmatprep.subr.mxu0 0.0
        %3188 = vmatpush1.msra.mxu0 0.0
        %3189 = vmatprep.subr.mxu0 0.0
        %3190 = vmatpush1.msra.mxu0 0.0
        %3191 = vmatprep.subr.mxu0 0.0
        %3192 = vmatpush1.msra.mxu0 0.0
        %3193 = vmatprep.subr.mxu0 0.0
        %3194 = vmatpush1.msra.mxu0 0.0
        %3195 = vmatprep.subr.mxu0 0.0
        %3196 = vmatpush1.msra.mxu0 0.0
        %3197 = vmatprep.subr.mxu0 0.0
        %3198 = vmatpush1.msra.mxu0 0.0
        %3199 = vmatprep.subr.mxu0 0.0
        %3200 = vmatpush1.msra.mxu0 0.0
        %3201 = vmatprep.mubr.f32.mxu0 0.0
        %3202 = vmatmul.mubr.f32.gmra.mrb[0].mxu0 %v3126
        %v3203 = vpop.f32.mrb[0].mxu0
        %v3204 = vadd.f32 %v3108, %v3203
        %v3205 = vpop.f32.mrb[0].mxu0
        %3206 = vmatprep.mubr.f32.mxu0 0.0
        %3207 = vmatmul.mubr.f32.gmra.mrb[0].mxu0 %v3129
        %v3208 = vpop.f32.mrb[0].mxu0
        %v3209 = vadd.f32 %v3113, %v3208
        %v3210 = vpop.f32.mrb[0].mxu0
        %3211 = vmatprep.mubr.f32.mxu0 0.0
        %3212 = vmatmul.mubr.f32.gmra.mrb[0].mxu0 %v3132
        %v3213 = vpop.f32.mrb[0].mxu0
        %v3214 = vadd.f32 %v3118, %v3213
        %v3215 = vpop.f32.mrb[0].mxu0
        %3216 = vmatprep.mubr.f32.mxu0 0.0
        %3217 = vmatmul.mubr.f32.gmra.mrb[0].mxu0 %v3135
        %v3218 = vpop.f32.mrb[0].mxu0
        %v3219 = vadd.f32 %v3123, %v3218
        %v3220 = vpop.f32.mrb[0].mxu0
        %3221 = vdwg.mxu0
        %v3222 = vmax.f32 %v3204, 0.0
        %v3223 = vmax.f32 %v3209, 0.0
        %v3224 = vmax.f32 %v3214, 0.0
        %v3225 = vmax.f32 %v3219, 0.0
        %v3226 = vld [vmem:[%s12] sm:$0xff]
        %v3227 = vld [vmem:[%s12 + $0x8] sm:$0xff]
        %v3228 = vld [vmem:[%s13] sm:$0xff]
        %v3229 = vld [vmem:[%s13 + $0x8] sm:$0xff]
        %3231 = vset.pattern.permute.xlu0 0
        %3232 = vperm.xlu0 %3231, %v3228
        %v3233 = vpop.permute.xlu0 %3232
        %3236 = vset.pattern.permute.xlu0 0
        %3237 = vperm.xlu0 %3236, %v3229
        %v3238 = vpop.permute.xlu0 %3237
        %v3241 = vsel %vm752, %v3226, 0
        %v3244 = vsel %vm752, %v3227, 0
        %3246 = vmatprep.subr.mxu0 0.0
        %3247 = vmatpush1.msra.mxu0 %v3222
        %3248 = vmatprep.subr.mxu0 0.0
        %3249 = vmatpush1.msra.mxu0 %v3223
        %3250 = vmatprep.subr.mxu0 0.0
        %3251 = vmatpush1.msra.mxu0 %v3224
        %3252 = vmatprep.subr.mxu0 0.0
        %3253 = vmatpush1.msra.mxu0 %v3225
        %3254 = vmatprep.subr.mxu0 0.0
        %3255 = vmatpush1.msra.mxu0 0.0
        %3256 = vmatprep.subr.mxu0 0.0
        %3257 = vmatpush1.msra.mxu0 0.0
        %3258 = vmatprep.subr.mxu0 0.0
        %3259 = vmatpush1.msra.mxu0 0.0
        %3260 = vmatprep.subr.mxu0 0.0
        %3261 = vmatpush1.msra.mxu0 0.0
        %3262 = vmatprep.subr.mxu0 0.0
        %3263 = vmatpush1.msra.mxu0 0.0
        %3264 = vmatprep.subr.mxu0 0.0
        %3265 = vmatpush1.msra.mxu0 0.0
        %3266 = vmatprep.subr.mxu0 0.0
        %3267 = vmatpush1.msra.mxu0 0.0
        %3268 = vmatprep.subr.mxu0 0.0
        %3269 = vmatpush1.msra.mxu0 0.0
        %3270 = vmatprep.subr.mxu0 0.0
        %3271 = vmatpush1.msra.mxu0 0.0
        %3272 = vmatprep.subr.mxu0 0.0
        %3273 = vmatpush1.msra.mxu0 0.0
        %3274 = vmatprep.subr.mxu0 0.0
        %3275 = vmatpush1.msra.mxu0 0.0
        %3276 = vmatprep.subr.mxu0 0.0
        %3277 = vmatpush1.msra.mxu0 0.0
        %3278 = vmatprep.subr.mxu0 0.0
        %3279 = vmatpush1.msra.mxu0 0.0
        %3280 = vmatprep.subr.mxu0 0.0
        %3281 = vmatpush1.msra.mxu0 0.0
        %3282 = vmatprep.subr.mxu0 0.0
        %3283 = vmatpush1.msra.mxu0 0.0
        %3284 = vmatprep.subr.mxu0 0.0
        %3285 = vmatpush1.msra.mxu0 0.0
        %3286 = vmatprep.subr.mxu0 0.0
        %3287 = vmatpush1.msra.mxu0 0.0
        %3288 = vmatprep.subr.mxu0 0.0
        %3289 = vmatpush1.msra.mxu0 0.0
        %3290 = vmatprep.subr.mxu0 0.0
        %3291 = vmatpush1.msra.mxu0 0.0
        %3292 = vmatprep.subr.mxu0 0.0
        %3293 = vmatpush1.msra.mxu0 0.0
        %3294 = vmatprep.subr.mxu0 0.0
        %3295 = vmatpush1.msra.mxu0 0.0
        %3296 = vmatprep.subr.mxu0 0.0
        %3297 = vmatpush1.msra.mxu0 0.0
        %3298 = vmatprep.subr.mxu0 0.0
        %3299 = vmatpush1.msra.mxu0 0.0
        %3300 = vmatprep.subr.mxu0 0.0
        %3301 = vmatpush1.msra.mxu0 0.0
        %3302 = vmatprep.subr.mxu0 0.0
        %3303 = vmatpush1.msra.mxu0 0.0
        %3304 = vmatprep.subr.mxu0 0.0
        %3305 = vmatpush1.msra.mxu0 0.0
        %3306 = vmatprep.subr.mxu0 0.0
        %3307 = vmatpush1.msra.mxu0 0.0
        %3308 = vmatprep.subr.mxu0 0.0
        %3309 = vmatpush1.msra.mxu0 0.0
        %3310 = vmatprep.mubr.f32.mxu0 0.0
        %3311 = vmatmul.mubr.f32.gmra.mrb[0].mxu0 %v3241
        %v3312 = vpop.f32.mrb[0].mxu0
        %v3313 = vadd.f32 %v3233, %v3312
        %v3314 = vpop.f32.mrb[0].mxu0
        %3315 = vmatprep.mubr.f32.mxu0 0.0
        %3316 = vmatmul.mubr.f32.gmra.mrb[0].mxu0 %v3244
        %v3317 = vpop.f32.mrb[0].mxu0
        %v3318 = vadd.f32 %v3238, %v3317
        %v3319 = vpop.f32.mrb[0].mxu0
        %3320 = vdwg.mxu0
        %3321 = vst.msk [vmem:[%s458] sm:$0xff] %vm594, %v3313
        %3322 = vst.msk [vmem:[%s458 + $0x8] sm:$0xff] %vm594, %v3318
        %s3323 = sand.u32 %s335, 1
        %s3324 = scalar_lea.sflag [#allocation3], %s3323
        %s3325 = sand.u32 %s335, 1
        %s3326 = smul.addr %s3325, 16
        %s3327 = scalar_lea.vmem [#allocation2], %s3326
        // Predicated region
        $region77: #{tpu_custom_call.1} parent=75 // pred_check
          %p3328 = pneg %p345
        $region78: #{tpu_custom_call.1} parent=75 // pred_check_branch
          %3330 = sbr.rel (%p3328) target = $region80
        $region79: #{tpu_custom_call.1} parent=75 // pred_region
          %s3332 = ssub.s32 256, 256
          %3333 = vsyncadd %s3324, %s3332
          %s3334 = smul.addr %s28, 2
          %s3335 = smul.addr %s3334, 128
          %s3336 = scalar_lea.hbm %s14, %s3335
          %s3337 = sshll.u32 %s3327, 4
          %s3338 = int_to_ptr.vmem [resolvable:$true] %s3337
          %3343 = dma.vmem_to_hbm [thread:$0]  %s3338, 256, %s3336, %s3324, 128, 128, 8
        $region80: #{tpu_custom_call.1} parent=75 // pred_fallthru
          _
      $region76: #{tpu_custom_call.1} parent=5 // pred_fallthru
        _
      %p3344 = scmp.le.s32.totalorder 2, %s23
      // Predicated region
      $region81: #{tpu_custom_call.1} parent=5 // pred_check
        %p3345 = pneg %p3344
      $region82: #{tpu_custom_call.1} parent=5 // pred_check_branch
        %3347 = sbr.rel (%p3345) target = $region84
      $region83: #{tpu_custom_call.1} parent=5 // pred_region
        %s3348 = ssub.s32 %s23, 2
        // Predicated region
        $region85: #{tpu_custom_call.1} parent=83 // pred_check
          %p3349 = pneg %p351
        $region86: #{tpu_custom_call.1} parent=83 // pred_check_branch
          %3351 = sbr.rel (%p3349) target = $region88
        $region87: #{tpu_custom_call.1} parent=83 // pred_region
          %s3352 = sand.u32 %s336, 1
          %s3353 = scalar_lea.sflag [#allocation3], %s3352
          %s3354 = sand.u32 %s336, 1
          %s3355 = smul.addr %s3354, 16
          %s3356 = scalar_lea.vmem [#allocation2], %s3355
          %3357 = dma.done %s3353, 256
        $region88: #{tpu_custom_call.1} parent=83 // pred_fallthru
          _
      $region84: #{tpu_custom_call.1} parent=5 // pred_fallthru
        _
    $region6: #{tpu_custom_call.1} parent=1 // loop_footer
      %s27 = sadd.s32 1, %s23
    $region7: #{tpu_custom_call.1} parent=1 // loop_footer_branch
      %22 = sbr.rel target = $region3
    $region8: #{tpu_custom_call.1} parent=1 // loop_exit
      _
    %3358 = vsyncpa [#allocation3], 1
    %s3359 = scalar_lea.sflag [#allocation3], 1
    %3360 = vsyncpa %s3359, 1

</llo_original>
